<compile_context>
chip_gen: v7x
topology: tpu7x:2x2x1
jax: 0.10.0
libtpu: 0.0.40
codegen_flags: <defaults>
</compile_context>

<pallas_src>
import functools

import jax
import jax.numpy as jnp
import numpy as np
from jax import lax
from jax.experimental import pallas as pl
from jax.experimental.pallas import tpu as pltpu


def _round_up(x, m):
    return (x + m - 1) // m * m


def _cbam_kernel(x_ref, w_fc_ref, b_fc_ref, col_mask_ref, w_sp_ref,
                 o_ref, pad_ref, cvec_ref, *, K, P, H, W, CB, OFF):
    # x_ref:        (C, HW)        VMEM, lane-dense (HW = H*W)
    # w_fc_ref:     (C, C)         VMEM   (1x1 conv weight)
    # b_fc_ref:     (C, 1)         VMEM   (1x1 conv bias)
    # col_mask_ref: (K, HW)        VMEM   per-dj column-validity masks
    # w_sp_ref:     (2*K*K,)       SMEM   spatial conv weight, [in_c, kh, kw]
    # pad_ref:      (2, HW+2*OFF)  VMEM scratch (flat zero-haloed mean/max maps)
    # cvec_ref:     (C, 1)         VMEM scratch (pooled, then channel gate)
    C, HW = x_ref.shape
    num_chunks = C // CB
    inv_hw = 1.0 / float(HW)
    inv_c = 1.0 / float(C)

    # ---- Channel attention: global avg pool (streamed over C) -> fc -> sigmoid
    def pool_body(ci, carry):
        i0 = pl.multiple_of(ci * CB, CB)
        xb = x_ref[pl.ds(i0, CB), :].astype(jnp.float32)            # (CB, HW)
        cvec_ref[pl.ds(i0, CB), :] = jnp.sum(xb, axis=1, keepdims=True) * inv_hw
        return carry
    lax.fori_loop(0, num_chunks, pool_body, 0)

    pooled = cvec_ref[...]                                          # (C, 1)
    logits = jnp.dot(w_fc_ref[...], pooled,
                     preferred_element_type=jnp.float32) + b_fc_ref[...]
    cvec_ref[...] = jax.nn.sigmoid(logits)                          # channel gate

    # ---- Channel-wise mean / max of (x * gate), streamed over C chunks ----
    def stat_body(ci, carry):
        s_acc, m_acc = carry
        i0 = pl.multiple_of(ci * CB, CB)
        xb = x_ref[pl.ds(i0, CB), :].astype(jnp.float32)
        ab = cvec_ref[pl.ds(i0, CB), :]
        xcb = xb * ab
        s_acc = s_acc + jnp.sum(xcb, axis=0, keepdims=True)
        m_acc = jnp.maximum(m_acc, jnp.max(xcb, axis=0, keepdims=True))
        return s_acc, m_acc

    sum_c, max_c = lax.fori_loop(
        0, num_chunks, stat_body,
        (jnp.zeros((1, HW), jnp.float32),
         jnp.full((1, HW), -jnp.inf, jnp.float32)))
    mean_c = sum_c * inv_c                                          # (1, HW)

    # ---- Spatial attention: KxK conv (zero pad P) over [mean_c, max_c] ----
    HWP = HW + 2 * OFF
    # Refresh only the zero halos (lane-aligned stores); interior is rewritten.
    pad_ref[:, 0:OFF] = jnp.zeros((2, OFF), jnp.float32)
    pad_ref[:, OFF + HW:HWP] = jnp.zeros((2, OFF), jnp.float32)
    pad_ref[0:1, OFF:OFF + HW] = mean_c
    pad_ref[1:2, OFF:OFF + HW] = max_c

    acc = jnp.zeros((1, HW), jnp.float32)
    for dj in range(K):                       # group taps by column offset
        d = dj - P
        inner = jnp.zeros((1, HW), jnp.float32)
        for c in range(2):
            for di in range(K):
                start = OFF + (di - P) * W + d          # static lane offset
                w = w_sp_ref[c * K * K + di * K + dj]   # scalar from SMEM
                inner = inner + w * pad_ref[c:c + 1, start:start + HW]
        if d == 0:
            acc = acc + inner                 # center column: mask is all-ones
        else:
            acc = acc + col_mask_ref[dj:dj + 1, :] * inner
    sp_att = jax.nn.sigmoid(acc)                                    # (1, HW)

    # ---- Final gating: out = x * channel_gate * spatial_gate (streamed) ----
    def out_body(ci, carry):
        i0 = pl.multiple_of(ci * CB, CB)
        xb = x_ref[pl.ds(i0, CB), :].astype(jnp.float32)
        ab = cvec_ref[pl.ds(i0, CB), :]
        o_ref[pl.ds(i0, CB), :] = (xb * ab * sp_att).astype(o_ref.dtype)
        return carry
    lax.fori_loop(0, num_chunks, out_body, 0)


def cbam_pallas(x, w_fc, b_fc, w_sp, kernel_size=7, channel_chunk=8):
    B, C, H, W = x.shape
    K = kernel_size
    assert K in (3, 7), "kernel size must be 3 or 7"
    P = K // 2
    HW = H * W
    OFF = _round_up(P * W + P, 128)           # lane-aligned halo width
    CB = channel_chunk if C % channel_chunk == 0 else C
    assert C % CB == 0

    # Precomputed per-dj column-validity masks for the flattened stencil
    # (a tap at column offset dj-P is valid iff 0 <= w + dj - P < W).
    col = np.arange(HW) % W
    col_mask = np.stack(
        [((col + (dj - P) >= 0) & (col + (dj - P) < W)).astype(np.float32)
         for dj in range(K)], axis=0)                                # (K, HW)
    col_mask = jnp.asarray(col_mask)

    x_flat = x.reshape(B, C, HW)              # lane-dense layout for the kernel
    w_fc2 = w_fc.reshape(C, C)
    b_fc2 = b_fc.reshape(C, 1)
    w_sp_flat = w_sp.reshape(-1)              # (2*K*K,), [in_c, kh, kw] order

    kernel = functools.partial(_cbam_kernel, K=K, P=P, H=H, W=W, CB=CB, OFF=OFF)
    out_flat = pl.pallas_call(
        kernel,
        out_shape=jax.ShapeDtypeStruct((B, C, HW), x.dtype),
        grid_spec=pltpu.PrefetchScalarGridSpec(
            num_scalar_prefetch=0,
            grid=(B,),
            in_specs=[
                pl.BlockSpec((None, C, HW), lambda b: (b, 0, 0)),
                pl.BlockSpec((C, C), lambda b: (0, 0)),
                pl.BlockSpec((C, 1), lambda b: (0, 0)),
                pl.BlockSpec((K, HW), lambda b: (0, 0)),
                pl.BlockSpec(memory_space=pltpu.MemorySpace.SMEM),
            ],
            out_specs=pl.BlockSpec((None, C, HW), lambda b: (b, 0, 0)),
            scratch_shapes=[
                pltpu.VMEM((2, HW + 2 * OFF), jnp.float32),
                pltpu.VMEM((C, 1), jnp.float32),
            ],
        ),
        compiler_params=pltpu.CompilerParams(
            dimension_semantics=("parallel",)),
    )(x_flat, w_fc2, b_fc2, col_mask, w_sp_flat)
    return out_flat.reshape(B, C, H, W)


def cbam_ref(x, w_fc, b_fc, w_sp, kernel_size=7):
    """Pure-JAX reference matching the PyTorch CBAM forward."""
    K = kernel_size
    pooled = jnp.mean(x, axis=(2, 3), keepdims=True)                     # (B,C,1,1)
    logits = jnp.einsum('oc,bcij->boij', w_fc, pooled) + b_fc.reshape(1, -1, 1, 1)
    xc = x * jax.nn.sigmoid(logits)
    m = jnp.mean(xc, axis=1, keepdims=True)
    mx = jnp.max(xc, axis=1, keepdims=True)
    cat = jnp.concatenate([m, mx], axis=1)                               # (B,2,H,W)
    conv = jax.lax.conv_general_dilated(
        cat, w_sp, window_strides=(1, 1),
        padding=[(K // 2, K // 2), (K // 2, K // 2)],
        dimension_numbers=('NCHW', 'OIHW', 'NCHW'))
    return xc * jax.nn.sigmoid(conv)


if __name__ == "__main__":
    B, C, H, W = 2, 4, 16, 16
    K = 7

    key = jax.random.PRNGKey(0)
    kx, kw1, kb1, kw2 = jax.random.split(key, 4)

    x = jax.random.normal(kx, (B, C, H, W), dtype=jnp.float32)
    # ChannelAttention.fc : Conv2d(C, C, 1, bias=True) -> weight (C, C, 1, 1), bias (C,)
    w_fc = jax.random.normal(kw1, (C, C), dtype=jnp.float32) * 0.5
    b_fc = jax.random.normal(kb1, (C,), dtype=jnp.float32) * 0.1
    # SpatialAttention.cv1 : Conv2d(2, 1, 7, padding=3, bias=False) -> weight (1, 2, 7, 7)
    w_sp = jax.random.normal(kw2, (1, 2, K, K), dtype=jnp.float32) * 0.1

    out = cbam_pallas(x, w_fc, b_fc, w_sp, kernel_size=K)
    out = jax.block_until_ready(out)

    ref = cbam_ref(x, w_fc, b_fc, w_sp, kernel_size=K)
    assert out.shape == (B, C, H, W)
    assert np.allclose(np.asarray(out), np.asarray(ref), atol=1e-5, rtol=1e-5), \
        "Pallas CBAM output mismatch vs JAX reference"

    print("KERNEL_OK")
</pallas_src>

<mosaic_0001>
module attributes {stable_mosaic.version = 11 : i64} {
  func.func @_cbam_kernel(%arg0: i32, %arg1: memref<1x4x256xf32, #tpu.memory_space<vmem>>, %arg2: memref<4x4xf32, #tpu.memory_space<vmem>>, %arg3: memref<4x1xf32, #tpu.memory_space<vmem>>, %arg4: memref<7x256xf32, #tpu.memory_space<vmem>>, %arg5: memref<98xf32, #tpu.memory_space<smem>>, %arg6: memref<1x4x256xf32, #tpu.memory_space<vmem>>, %arg7: memref<2x512xf32, #tpu.memory_space<vmem>>, %arg8: memref<4x1xf32, #tpu.memory_space<vmem>>) attributes {dimension_semantics = [#tpu.dimension_semantics<parallel>], iteration_bounds = array<i64: 2>, scalar_prefetch = 0 : i64, scratch_operands = 2 : i64, tpu.core_type = #tpu.core_type<tc>, window_params = [{transform_indices = @transform_0, window_bounds = array<i64: 1, 4, 256>}, {pipeline_mode = #tpu.pipeline_mode<synchronous>, transform_indices = @transform_1, window_bounds = array<i64: 4, 4>}, {pipeline_mode = #tpu.pipeline_mode<synchronous>, transform_indices = @transform_2, window_bounds = array<i64: 4, 1>}, {pipeline_mode = #tpu.pipeline_mode<synchronous>, transform_indices = @transform_3, window_bounds = array<i64: 7, 256>}, {transform_indices = @transform_4, window_bounds = array<i64: 98>}, {transform_indices = @transform_5, window_bounds = array<i64: 1, 4, 256>}]} {
    %c0_i32 = arith.constant 0 : i32
    %c4_i32 = arith.constant 4 : i32
    %0 = arith.muli %c0_i32, %c4_i32 : i32
    %1 = tpu.assume_multiple %0, 4 : i32
    %c0 = arith.constant 0 : index
    %2 = arith.index_cast %1 : i32 to index
    %c0_0 = arith.constant 0 : index
    %3 = vector.load %arg1[%c0, %2, %c0_0] : memref<1x4x256xf32, #tpu.memory_space<vmem>>, vector<1x4x256xf32>
    %4 = vector.shape_cast %3 : vector<1x4x256xf32> to vector<4x256xf32>
    %cst = arith.constant dense<0.000000e+00> : vector<4xf32>
    %5 = vector.multi_reduction <add>, %4, %cst [1] : vector<4x256xf32> to vector<4xf32>
    %6 = vector.shape_cast %5 : vector<4xf32> to vector<4x1xf32>
    %cst_1 = arith.constant 3.906250e-03 : f32
    %7 = vector.broadcast %cst_1 : f32 to vector<4x1xf32>
    %8 = arith.mulf %6, %7 : vector<4x1xf32>
    %9 = arith.index_cast %1 : i32 to index
    %c0_2 = arith.constant 0 : index
    %10 = vector.load %arg8[%9, %c0_2] : memref<4x1xf32, #tpu.memory_space<vmem>>, vector<4x1xf32>
    tpu.vector_store %arg8[%9, %c0_2], %8 {strides = array<i32>} : memref<4x1xf32, #tpu.memory_space<vmem>>, vector<4x1xf32>,
    %c1_i32 = arith.constant 1 : i32
    %c0_3 = arith.constant 0 : index
    %c0_4 = arith.constant 0 : index
    %11 = vector.load %arg8[%c0_3, %c0_4] : memref<4x1xf32, #tpu.memory_space<vmem>>, vector<4x1xf32>
    %c0_5 = arith.constant 0 : index
    %c0_6 = arith.constant 0 : index
    %12 = vector.load %arg2[%c0_5, %c0_6] : memref<4x4xf32, #tpu.memory_space<vmem>>, vector<4x4xf32>
    %cst_7 = arith.constant dense<0.000000e+00> : vector<4x1xf32>
    %13 = tpu.matmul %12, %11, %cst_7 {dimension_numbers = #tpu.dot_dimension_numbers<[1], [0], [0], [1], [0, 0, 1, 1], [], []>} : vector<4x4xf32>, vector<4x1xf32>, vector<4x1xf32> -> vector<4x1xf32>
    %c0_8 = arith.constant 0 : index
    %c0_9 = arith.constant 0 : index
    %14 = vector.load %arg3[%c0_8, %c0_9] : memref<4x1xf32, #tpu.memory_space<vmem>>, vector<4x1xf32>
    %15 = arith.addf %13, %14 : vector<4x1xf32>
    %16 = arith.negf %15 : vector<4x1xf32>
    %17 = math.exp %16 : vector<4x1xf32>
    %cst_10 = arith.constant 1.000000e+00 : f32
    %18 = vector.broadcast %cst_10 : f32 to vector<4x1xf32>
    %19 = arith.addf %18, %17 : vector<4x1xf32>
    %20 = arith.divf %18, %19 : vector<4x1xf32>
    %c0_11 = arith.constant 0 : index
    %c0_12 = arith.constant 0 : index
    %21 = vector.load %arg8[%c0_11, %c0_12] : memref<4x1xf32, #tpu.memory_space<vmem>>, vector<4x1xf32>
    tpu.vector_store %arg8[%c0_11, %c0_12], %20 {strides = array<i32>} : memref<4x1xf32, #tpu.memory_space<vmem>>, vector<4x1xf32>,
    %cst_13 = arith.constant 0.000000e+00 : f32
    %22 = vector.broadcast %cst_13 : f32 to vector<1x256xf32>
    %cst_14 = arith.constant 0xFF800000 : f32
    %23 = vector.broadcast %cst_14 : f32 to vector<1x256xf32>
    %c0_i32_15 = arith.constant 0 : i32
    %c4_i32_16 = arith.constant 4 : i32
    %24 = arith.muli %c0_i32_15, %c4_i32_16 : i32
    %25 = tpu.assume_multiple %24, 4 : i32
    %c0_17 = arith.constant 0 : index
    %26 = arith.index_cast %25 : i32 to index
    %c0_18 = arith.constant 0 : index
    %27 = vector.load %arg1[%c0_17, %26, %c0_18] : memref<1x4x256xf32, #tpu.memory_space<vmem>>, vector<1x4x256xf32>
    %28 = vector.shape_cast %27 : vector<1x4x256xf32> to vector<4x256xf32>
    %29 = arith.index_cast %25 : i32 to index
    %c0_19 = arith.constant 0 : index
    %30 = vector.load %arg8[%29, %c0_19] : memref<4x1xf32, #tpu.memory_space<vmem>>, vector<4x1xf32>
    %31 = vector.broadcast %30 : vector<4x1xf32> to vector<4x256xf32>
    %32 = arith.mulf %28, %31 : vector<4x256xf32>
    %cst_20 = arith.constant dense<0.000000e+00> : vector<256xf32>
    %33 = vector.multi_reduction <add>, %32, %cst_20 [0] : vector<4x256xf32> to vector<256xf32>
    %34 = vector.shape_cast %33 : vector<256xf32> to vector<1x256xf32>
    %35 = arith.addf %22, %34 : vector<1x256xf32>
    %cst_21 = arith.constant dense<0xFF800000> : vector<256xf32>
    %36 = vector.multi_reduction <maximumf>, %32, %cst_21 [0] : vector<4x256xf32> to vector<256xf32>
    %37 = vector.shape_cast %36 : vector<256xf32> to vector<1x256xf32>
    %38 = arith.maximumf %23, %37 : vector<1x256xf32>
    %c1_i32_22 = arith.constant 1 : i32
    %cst_23 = arith.constant 2.500000e-01 : f32
    %39 = vector.broadcast %cst_23 : f32 to vector<1x256xf32>
    %40 = arith.mulf %35, %39 : vector<1x256xf32>
    %cst_24 = arith.constant 0.000000e+00 : f32
    %41 = vector.broadcast %cst_24 : f32 to vector<2x128xf32>
    %c0_25 = arith.constant 0 : index
    %c0_26 = arith.constant 0 : index
    %42 = vector.load %arg7[%c0_25, %c0_26] : memref<2x512xf32, #tpu.memory_space<vmem>>, vector<2x128xf32>
    tpu.vector_store %arg7[%c0_25, %c0_26], %41 {strides = array<i32>} : memref<2x512xf32, #tpu.memory_space<vmem>>, vector<2x128xf32>,
    %cst_27 = arith.constant 0.000000e+00 : f32
    %43 = vector.broadcast %cst_27 : f32 to vector<2x128xf32>
    %c0_28 = arith.constant 0 : index
    %c384 = arith.constant 384 : index
    %44 = vector.load %arg7[%c0_28, %c384] : memref<2x512xf32, #tpu.memory_space<vmem>>, vector<2x128xf32>
    tpu.vector_store %arg7[%c0_28, %c384], %43 {strides = array<i32>} : memref<2x512xf32, #tpu.memory_space<vmem>>, vector<2x128xf32>,
    %c0_29 = arith.constant 0 : index
    %c128 = arith.constant 128 : index
    %45 = vector.load %arg7[%c0_29, %c128] : memref<2x512xf32, #tpu.memory_space<vmem>>, vector<1x256xf32>
    tpu.vector_store %arg7[%c0_29, %c128], %40 {strides = array<i32>} : memref<2x512xf32, #tpu.memory_space<vmem>>, vector<1x256xf32>,
    %c1 = arith.constant 1 : index
    %c128_30 = arith.constant 128 : index
    %46 = vector.load %arg7[%c1, %c128_30] : memref<2x512xf32, #tpu.memory_space<vmem>>, vector<1x256xf32>
    tpu.vector_store %arg7[%c1, %c128_30], %38 {strides = array<i32>} : memref<2x512xf32, #tpu.memory_space<vmem>>, vector<1x256xf32>,
    %cst_31 = arith.constant 0.000000e+00 : f32
    %47 = vector.broadcast %cst_31 : f32 to vector<1x256xf32>
    %cst_32 = arith.constant 0.000000e+00 : f32
    %48 = vector.broadcast %cst_32 : f32 to vector<1x256xf32>
    %c0_33 = arith.constant 0 : index
    %49 = memref.load %arg5[%c0_33] : memref<98xf32, #tpu.memory_space<smem>>
    %c0_34 = arith.constant 0 : index
    %c77 = arith.constant 77 : index
    %50 = vector.load %arg7[%c0_34, %c77] : memref<2x512xf32, #tpu.memory_space<vmem>>, vector<1x256xf32>
    %51 = vector.broadcast %49 : f32 to vector<1x256xf32>
    %52 = arith.mulf %51, %50 : vector<1x256xf32>
    %53 = arith.addf %48, %52 : vector<1x256xf32>
    %c7 = arith.constant 7 : index
    %54 = memref.load %arg5[%c7] : memref<98xf32, #tpu.memory_space<smem>>
    %c0_35 = arith.constant 0 : index
    %c93 = arith.constant 93 : index
    %55 = vector.load %arg7[%c0_35, %c93] : memref<2x512xf32, #tpu.memory_space<vmem>>, vector<1x256xf32>
    %56 = vector.broadcast %54 : f32 to vector<1x256xf32>
    %57 = arith.mulf %56, %55 : vector<1x256xf32>
    %58 = arith.addf %53, %57 : vector<1x256xf32>
    %c14 = arith.constant 14 : index
    %59 = memref.load %arg5[%c14] : memref<98xf32, #tpu.memory_space<smem>>
    %c0_36 = arith.constant 0 : index
    %c109 = arith.constant 109 : index
    %60 = vector.load %arg7[%c0_36, %c109] : memref<2x512xf32, #tpu.memory_space<vmem>>, vector<1x256xf32>
    %61 = vector.broadcast %59 : f32 to vector<1x256xf32>
    %62 = arith.mulf %61, %60 : vector<1x256xf32>
    %63 = arith.addf %58, %62 : vector<1x256xf32>
    %c21 = arith.constant 21 : index
    %64 = memref.load %arg5[%c21] : memref<98xf32, #tpu.memory_space<smem>>
    %c0_37 = arith.constant 0 : index
    %c125 = arith.constant 125 : index
    %65 = vector.load %arg7[%c0_37, %c125] : memref<2x512xf32, #tpu.memory_space<vmem>>, vector<1x256xf32>
    %66 = vector.broadcast %64 : f32 to vector<1x256xf32>
    %67 = arith.mulf %66, %65 : vector<1x256xf32>
    %68 = arith.addf %63, %67 : vector<1x256xf32>
    %c28 = arith.constant 28 : index
    %69 = memref.load %arg5[%c28] : memref<98xf32, #tpu.memory_space<smem>>
    %c0_38 = arith.constant 0 : index
    %c141 = arith.constant 141 : index
    %70 = vector.load %arg7[%c0_38, %c141] : memref<2x512xf32, #tpu.memory_space<vmem>>, vector<1x256xf32>
    %71 = vector.broadcast %69 : f32 to vector<1x256xf32>
    %72 = arith.mulf %71, %70 : vector<1x256xf32>
    %73 = arith.addf %68, %72 : vector<1x256xf32>
    %c35 = arith.constant 35 : index
    %74 = memref.load %arg5[%c35] : memref<98xf32, #tpu.memory_space<smem>>
    %c0_39 = arith.constant 0 : index
    %c157 = arith.constant 157 : index
    %75 = vector.load %arg7[%c0_39, %c157] : memref<2x512xf32, #tpu.memory_space<vmem>>, vector<1x256xf32>
    %76 = vector.broadcast %74 : f32 to vector<1x256xf32>
    %77 = arith.mulf %76, %75 : vector<1x256xf32>
    %78 = arith.addf %73, %77 : vector<1x256xf32>
    %c42 = arith.constant 42 : index
    %79 = memref.load %arg5[%c42] : memref<98xf32, #tpu.memory_space<smem>>
    %c0_40 = arith.constant 0 : index
    %c173 = arith.constant 173 : index
    %80 = vector.load %arg7[%c0_40, %c173] : memref<2x512xf32, #tpu.memory_space<vmem>>, vector<1x256xf32>
    %81 = vector.broadcast %79 : f32 to vector<1x256xf32>
    %82 = arith.mulf %81, %80 : vector<1x256xf32>
    %83 = arith.addf %78, %82 : vector<1x256xf32>
    %c49 = arith.constant 49 : index
    %84 = memref.load %arg5[%c49] : memref<98xf32, #tpu.memory_space<smem>>
    %c1_41 = arith.constant 1 : index
    %c77_42 = arith.constant 77 : index
    %85 = vector.load %arg7[%c1_41, %c77_42] : memref<2x512xf32, #tpu.memory_space<vmem>>, vector<1x256xf32>
    %86 = vector.broadcast %84 : f32 to vector<1x256xf32>
    %87 = arith.mulf %86, %85 : vector<1x256xf32>
    %88 = arith.addf %83, %87 : vector<1x256xf32>
    %c56 = arith.constant 56 : index
    %89 = memref.load %arg5[%c56] : memref<98xf32, #tpu.memory_space<smem>>
    %c1_43 = arith.constant 1 : index
    %c93_44 = arith.constant 93 : index
    %90 = vector.load %arg7[%c1_43, %c93_44] : memref<2x512xf32, #tpu.memory_space<vmem>>, vector<1x256xf32>
    %91 = vector.broadcast %89 : f32 to vector<1x256xf32>
    %92 = arith.mulf %91, %90 : vector<1x256xf32>
    %93 = arith.addf %88, %92 : vector<1x256xf32>
    %c63 = arith.constant 63 : index
    %94 = memref.load %arg5[%c63] : memref<98xf32, #tpu.memory_space<smem>>
    %c1_45 = arith.constant 1 : index
    %c109_46 = arith.constant 109 : index
    %95 = vector.load %arg7[%c1_45, %c109_46] : memref<2x512xf32, #tpu.memory_space<vmem>>, vector<1x256xf32>
    %96 = vector.broadcast %94 : f32 to vector<1x256xf32>
    %97 = arith.mulf %96, %95 : vector<1x256xf32>
    %98 = arith.addf %93, %97 : vector<1x256xf32>
    %c70 = arith.constant 70 : index
    %99 = memref.load %arg5[%c70] : memref<98xf32, #tpu.memory_space<smem>>
    %c1_47 = arith.constant 1 : index
    %c125_48 = arith.constant 125 : index
    %100 = vector.load %arg7[%c1_47, %c125_48] : memref<2x512xf32, #tpu.memory_space<vmem>>, vector<1x256xf32>
    %101 = vector.broadcast %99 : f32 to vector<1x256xf32>
    %102 = arith.mulf %101, %100 : vector<1x256xf32>
    %103 = arith.addf %98, %102 : vector<1x256xf32>
    %c77_49 = arith.constant 77 : index
    %104 = memref.load %arg5[%c77_49] : memref<98xf32, #tpu.memory_space<smem>>
    %c1_50 = arith.constant 1 : index
    %c141_51 = arith.constant 141 : index
    %105 = vector.load %arg7[%c1_50, %c141_51] : memref<2x512xf32, #tpu.memory_space<vmem>>, vector<1x256xf32>
    %106 = vector.broadcast %104 : f32 to vector<1x256xf32>
    %107 = arith.mulf %106, %105 : vector<1x256xf32>
    %108 = arith.addf %103, %107 : vector<1x256xf32>
    %c84 = arith.constant 84 : index
    %109 = memref.load %arg5[%c84] : memref<98xf32, #tpu.memory_space<smem>>
    %c1_52 = arith.constant 1 : index
    %c157_53 = arith.constant 157 : index
    %110 = vector.load %arg7[%c1_52, %c157_53] : memref<2x512xf32, #tpu.memory_space<vmem>>, vector<1x256xf32>
    %111 = vector.broadcast %109 : f32 to vector<1x256xf32>
    %112 = arith.mulf %111, %110 : vector<1x256xf32>
    %113 = arith.addf %108, %112 : vector<1x256xf32>
    %c91 = arith.constant 91 : index
    %114 = memref.load %arg5[%c91] : memref<98xf32, #tpu.memory_space<smem>>
    %c1_54 = arith.constant 1 : index
    %c173_55 = arith.constant 173 : index
    %115 = vector.load %arg7[%c1_54, %c173_55] : memref<2x512xf32, #tpu.memory_space<vmem>>, vector<1x256xf32>
    %116 = vector.broadcast %114 : f32 to vector<1x256xf32>
    %117 = arith.mulf %116, %115 : vector<1x256xf32>
    %118 = arith.addf %113, %117 : vector<1x256xf32>
    %c0_56 = arith.constant 0 : index
    %c0_57 = arith.constant 0 : index
    %119 = vector.load %arg4[%c0_56, %c0_57] : memref<7x256xf32, #tpu.memory_space<vmem>>, vector<1x256xf32>
    %120 = arith.mulf %119, %118 : vector<1x256xf32>
    %121 = arith.addf %47, %120 : vector<1x256xf32>
    %cst_58 = arith.constant 0.000000e+00 : f32
    %122 = vector.broadcast %cst_58 : f32 to vector<1x256xf32>
    %c1_59 = arith.constant 1 : index
    %123 = memref.load %arg5[%c1_59] : memref<98xf32, #tpu.memory_space<smem>>
    %c0_60 = arith.constant 0 : index
    %c78 = arith.constant 78 : index
    %124 = vector.load %arg7[%c0_60, %c78] : memref<2x512xf32, #tpu.memory_space<vmem>>, vector<1x256xf32>
    %125 = vector.broadcast %123 : f32 to vector<1x256xf32>
    %126 = arith.mulf %125, %124 : vector<1x256xf32>
    %127 = arith.addf %122, %126 : vector<1x256xf32>
    %c8 = arith.constant 8 : index
    %128 = memref.load %arg5[%c8] : memref<98xf32, #tpu.memory_space<smem>>
    %c0_61 = arith.constant 0 : index
    %c94 = arith.constant 94 : index
    %129 = vector.load %arg7[%c0_61, %c94] : memref<2x512xf32, #tpu.memory_space<vmem>>, vector<1x256xf32>
    %130 = vector.broadcast %128 : f32 to vector<1x256xf32>
    %131 = arith.mulf %130, %129 : vector<1x256xf32>
    %132 = arith.addf %127, %131 : vector<1x256xf32>
    %c15 = arith.constant 15 : index
    %133 = memref.load %arg5[%c15] : memref<98xf32, #tpu.memory_space<smem>>
    %c0_62 = arith.constant 0 : index
    %c110 = arith.constant 110 : index
    %134 = vector.load %arg7[%c0_62, %c110] : memref<2x512xf32, #tpu.memory_space<vmem>>, vector<1x256xf32>
    %135 = vector.broadcast %133 : f32 to vector<1x256xf32>
    %136 = arith.mulf %135, %134 : vector<1x256xf32>
    %137 = arith.addf %132, %136 : vector<1x256xf32>
    %c22 = arith.constant 22 : index
    %138 = memref.load %arg5[%c22] : memref<98xf32, #tpu.memory_space<smem>>
    %c0_63 = arith.constant 0 : index
    %c126 = arith.constant 126 : index
    %139 = vector.load %arg7[%c0_63, %c126] : memref<2x512xf32, #tpu.memory_space<vmem>>, vector<1x256xf32>
    %140 = vector.broadcast %138 : f32 to vector<1x256xf32>
    %141 = arith.mulf %140, %139 : vector<1x256xf32>
    %142 = arith.addf %137, %141 : vector<1x256xf32>
    %c29 = arith.constant 29 : index
    %143 = memref.load %arg5[%c29] : memref<98xf32, #tpu.memory_space<smem>>
    %c0_64 = arith.constant 0 : index
    %c142 = arith.constant 142 : index
    %144 = vector.load %arg7[%c0_64, %c142] : memref<2x512xf32, #tpu.memory_space<vmem>>, vector<1x256xf32>
    %145 = vector.broadcast %143 : f32 to vector<1x256xf32>
    %146 = arith.mulf %145, %144 : vector<1x256xf32>
    %147 = arith.addf %142, %146 : vector<1x256xf32>
    %c36 = arith.constant 36 : index
    %148 = memref.load %arg5[%c36] : memref<98xf32, #tpu.memory_space<smem>>
    %c0_65 = arith.constant 0 : index
    %c158 = arith.constant 158 : index
    %149 = vector.load %arg7[%c0_65, %c158] : memref<2x512xf32, #tpu.memory_space<vmem>>, vector<1x256xf32>
    %150 = vector.broadcast %148 : f32 to vector<1x256xf32>
    %151 = arith.mulf %150, %149 : vector<1x256xf32>
    %152 = arith.addf %147, %151 : vector<1x256xf32>
    %c43 = arith.constant 43 : index
    %153 = memref.load %arg5[%c43] : memref<98xf32, #tpu.memory_space<smem>>
    %c0_66 = arith.constant 0 : index
    %c174 = arith.constant 174 : index
    %154 = vector.load %arg7[%c0_66, %c174] : memref<2x512xf32, #tpu.memory_space<vmem>>, vector<1x256xf32>
    %155 = vector.broadcast %153 : f32 to vector<1x256xf32>
    %156 = arith.mulf %155, %154 : vector<1x256xf32>
    %157 = arith.addf %152, %156 : vector<1x256xf32>
    %c50 = arith.constant 50 : index
    %158 = memref.load %arg5[%c50] : memref<98xf32, #tpu.memory_space<smem>>
    %c1_67 = arith.constant 1 : index
    %c78_68 = arith.constant 78 : index
    %159 = vector.load %arg7[%c1_67, %c78_68] : memref<2x512xf32, #tpu.memory_space<vmem>>, vector<1x256xf32>
    %160 = vector.broadcast %158 : f32 to vector<1x256xf32>
    %161 = arith.mulf %160, %159 : vector<1x256xf32>
    %162 = arith.addf %157, %161 : vector<1x256xf32>
    %c57 = arith.constant 57 : index
    %163 = memref.load %arg5[%c57] : memref<98xf32, #tpu.memory_space<smem>>
    %c1_69 = arith.constant 1 : index
    %c94_70 = arith.constant 94 : index
    %164 = vector.load %arg7[%c1_69, %c94_70] : memref<2x512xf32, #tpu.memory_space<vmem>>, vector<1x256xf32>
    %165 = vector.broadcast %163 : f32 to vector<1x256xf32>
    %166 = arith.mulf %165, %164 : vector<1x256xf32>
    %167 = arith.addf %162, %166 : vector<1x256xf32>
    %c64 = arith.constant 64 : index
    %168 = memref.load %arg5[%c64] : memref<98xf32, #tpu.memory_space<smem>>
    %c1_71 = arith.constant 1 : index
    %c110_72 = arith.constant 110 : index
    %169 = vector.load %arg7[%c1_71, %c110_72] : memref<2x512xf32, #tpu.memory_space<vmem>>, vector<1x256xf32>
    %170 = vector.broadcast %168 : f32 to vector<1x256xf32>
    %171 = arith.mulf %170, %169 : vector<1x256xf32>
    %172 = arith.addf %167, %171 : vector<1x256xf32>
    %c71 = arith.constant 71 : index
    %173 = memref.load %arg5[%c71] : memref<98xf32, #tpu.memory_space<smem>>
    %c1_73 = arith.constant 1 : index
    %c126_74 = arith.constant 126 : index
    %174 = vector.load %arg7[%c1_73, %c126_74] : memref<2x512xf32, #tpu.memory_space<vmem>>, vector<1x256xf32>
    %175 = vector.broadcast %173 : f32 to vector<1x256xf32>
    %176 = arith.mulf %175, %174 : vector<1x256xf32>
    %177 = arith.addf %172, %176 : vector<1x256xf32>
    %c78_75 = arith.constant 78 : index
    %178 = memref.load %arg5[%c78_75] : memref<98xf32, #tpu.memory_space<smem>>
    %c1_76 = arith.constant 1 : index
    %c142_77 = arith.constant 142 : index
    %179 = vector.load %arg7[%c1_76, %c142_77] : memref<2x512xf32, #tpu.memory_space<vmem>>, vector<1x256xf32>
    %180 = vector.broadcast %178 : f32 to vector<1x256xf32>
    %181 = arith.mulf %180, %179 : vector<1x256xf32>
    %182 = arith.addf %177, %181 : vector<1x256xf32>
    %c85 = arith.constant 85 : index
    %183 = memref.load %arg5[%c85] : memref<98xf32, #tpu.memory_space<smem>>
    %c1_78 = arith.constant 1 : index
    %c158_79 = arith.constant 158 : index
    %184 = vector.load %arg7[%c1_78, %c158_79] : memref<2x512xf32, #tpu.memory_space<vmem>>, vector<1x256xf32>
    %185 = vector.broadcast %183 : f32 to vector<1x256xf32>
    %186 = arith.mulf %185, %184 : vector<1x256xf32>
    %187 = arith.addf %182, %186 : vector<1x256xf32>
    %c92 = arith.constant 92 : index
    %188 = memref.load %arg5[%c92] : memref<98xf32, #tpu.memory_space<smem>>
    %c1_80 = arith.constant 1 : index
    %c174_81 = arith.constant 174 : index
    %189 = vector.load %arg7[%c1_80, %c174_81] : memref<2x512xf32, #tpu.memory_space<vmem>>, vector<1x256xf32>
    %190 = vector.broadcast %188 : f32 to vector<1x256xf32>
    %191 = arith.mulf %190, %189 : vector<1x256xf32>
    %192 = arith.addf %187, %191 : vector<1x256xf32>
    %c1_82 = arith.constant 1 : index
    %c0_83 = arith.constant 0 : index
    %193 = vector.load %arg4[%c1_82, %c0_83] : memref<7x256xf32, #tpu.memory_space<vmem>>, vector<1x256xf32>
    %194 = arith.mulf %193, %192 : vector<1x256xf32>
    %195 = arith.addf %121, %194 : vector<1x256xf32>
    %cst_84 = arith.constant 0.000000e+00 : f32
    %196 = vector.broadcast %cst_84 : f32 to vector<1x256xf32>
    %c2 = arith.constant 2 : index
    %197 = memref.load %arg5[%c2] : memref<98xf32, #tpu.memory_space<smem>>
    %c0_85 = arith.constant 0 : index
    %c79 = arith.constant 79 : index
    %198 = vector.load %arg7[%c0_85, %c79] : memref<2x512xf32, #tpu.memory_space<vmem>>, vector<1x256xf32>
    %199 = vector.broadcast %197 : f32 to vector<1x256xf32>
    %200 = arith.mulf %199, %198 : vector<1x256xf32>
    %201 = arith.addf %196, %200 : vector<1x256xf32>
    %c9 = arith.constant 9 : index
    %202 = memref.load %arg5[%c9] : memref<98xf32, #tpu.memory_space<smem>>
    %c0_86 = arith.constant 0 : index
    %c95 = arith.constant 95 : index
    %203 = vector.load %arg7[%c0_86, %c95] : memref<2x512xf32, #tpu.memory_space<vmem>>, vector<1x256xf32>
    %204 = vector.broadcast %202 : f32 to vector<1x256xf32>
    %205 = arith.mulf %204, %203 : vector<1x256xf32>
    %206 = arith.addf %201, %205 : vector<1x256xf32>
    %c16 = arith.constant 16 : index
    %207 = memref.load %arg5[%c16] : memref<98xf32, #tpu.memory_space<smem>>
    %c0_87 = arith.constant 0 : index
    %c111 = arith.constant 111 : index
    %208 = vector.load %arg7[%c0_87, %c111] : memref<2x512xf32, #tpu.memory_space<vmem>>, vector<1x256xf32>
    %209 = vector.broadcast %207 : f32 to vector<1x256xf32>
    %210 = arith.mulf %209, %208 : vector<1x256xf32>
    %211 = arith.addf %206, %210 : vector<1x256xf32>
    %c23 = arith.constant 23 : index
    %212 = memref.load %arg5[%c23] : memref<98xf32, #tpu.memory_space<smem>>
    %c0_88 = arith.constant 0 : index
    %c127 = arith.constant 127 : index
    %213 = vector.load %arg7[%c0_88, %c127] : memref<2x512xf32, #tpu.memory_space<vmem>>, vector<1x256xf32>
    %214 = vector.broadcast %212 : f32 to vector<1x256xf32>
    %215 = arith.mulf %214, %213 : vector<1x256xf32>
    %216 = arith.addf %211, %215 : vector<1x256xf32>
    %c30 = arith.constant 30 : index
    %217 = memref.load %arg5[%c30] : memref<98xf32, #tpu.memory_space<smem>>
    %c0_89 = arith.constant 0 : index
    %c143 = arith.constant 143 : index
    %218 = vector.load %arg7[%c0_89, %c143] : memref<2x512xf32, #tpu.memory_space<vmem>>, vector<1x256xf32>
    %219 = vector.broadcast %217 : f32 to vector<1x256xf32>
    %220 = arith.mulf %219, %218 : vector<1x256xf32>
    %221 = arith.addf %216, %220 : vector<1x256xf32>
    %c37 = arith.constant 37 : index
    %222 = memref.load %arg5[%c37] : memref<98xf32, #tpu.memory_space<smem>>
    %c0_90 = arith.constant 0 : index
    %c159 = arith.constant 159 : index
    %223 = vector.load %arg7[%c0_90, %c159] : memref<2x512xf32, #tpu.memory_space<vmem>>, vector<1x256xf32>
    %224 = vector.broadcast %222 : f32 to vector<1x256xf32>
    %225 = arith.mulf %224, %223 : vector<1x256xf32>
    %226 = arith.addf %221, %225 : vector<1x256xf32>
    %c44 = arith.constant 44 : index
    %227 = memref.load %arg5[%c44] : memref<98xf32, #tpu.memory_space<smem>>
    %c0_91 = arith.constant 0 : index
    %c175 = arith.constant 175 : index
    %228 = vector.load %arg7[%c0_91, %c175] : memref<2x512xf32, #tpu.memory_space<vmem>>, vector<1x256xf32>
    %229 = vector.broadcast %227 : f32 to vector<1x256xf32>
    %230 = arith.mulf %229, %228 : vector<1x256xf32>
    %231 = arith.addf %226, %230 : vector<1x256xf32>
    %c51 = arith.constant 51 : index
    %232 = memref.load %arg5[%c51] : memref<98xf32, #tpu.memory_space<smem>>
    %c1_92 = arith.constant 1 : index
    %c79_93 = arith.constant 79 : index
    %233 = vector.load %arg7[%c1_92, %c79_93] : memref<2x512xf32, #tpu.memory_space<vmem>>, vector<1x256xf32>
    %234 = vector.broadcast %232 : f32 to vector<1x256xf32>
    %235 = arith.mulf %234, %233 : vector<1x256xf32>
    %236 = arith.addf %231, %235 : vector<1x256xf32>
    %c58 = arith.constant 58 : index
    %237 = memref.load %arg5[%c58] : memref<98xf32, #tpu.memory_space<smem>>
    %c1_94 = arith.constant 1 : index
    %c95_95 = arith.constant 95 : index
    %238 = vector.load %arg7[%c1_94, %c95_95] : memref<2x512xf32, #tpu.memory_space<vmem>>, vector<1x256xf32>
    %239 = vector.broadcast %237 : f32 to vector<1x256xf32>
    %240 = arith.mulf %239, %238 : vector<1x256xf32>
    %241 = arith.addf %236, %240 : vector<1x256xf32>
    %c65 = arith.constant 65 : index
    %242 = memref.load %arg5[%c65] : memref<98xf32, #tpu.memory_space<smem>>
    %c1_96 = arith.constant 1 : index
    %c111_97 = arith.constant 111 : index
    %243 = vector.load %arg7[%c1_96, %c111_97] : memref<2x512xf32, #tpu.memory_space<vmem>>, vector<1x256xf32>
    %244 = vector.broadcast %242 : f32 to vector<1x256xf32>
    %245 = arith.mulf %244, %243 : vector<1x256xf32>
    %246 = arith.addf %241, %245 : vector<1x256xf32>
    %c72 = arith.constant 72 : index
    %247 = memref.load %arg5[%c72] : memref<98xf32, #tpu.memory_space<smem>>
    %c1_98 = arith.constant 1 : index
    %c127_99 = arith.constant 127 : index
    %248 = vector.load %arg7[%c1_98, %c127_99] : memref<2x512xf32, #tpu.memory_space<vmem>>, vector<1x256xf32>
    %249 = vector.broadcast %247 : f32 to vector<1x256xf32>
    %250 = arith.mulf %249, %248 : vector<1x256xf32>
    %251 = arith.addf %246, %250 : vector<1x256xf32>
    %c79_100 = arith.constant 79 : index
    %252 = memref.load %arg5[%c79_100] : memref<98xf32, #tpu.memory_space<smem>>
    %c1_101 = arith.constant 1 : index
    %c143_102 = arith.constant 143 : index
    %253 = vector.load %arg7[%c1_101, %c143_102] : memref<2x512xf32, #tpu.memory_space<vmem>>, vector<1x256xf32>
    %254 = vector.broadcast %252 : f32 to vector<1x256xf32>
    %255 = arith.mulf %254, %253 : vector<1x256xf32>
    %256 = arith.addf %251, %255 : vector<1x256xf32>
    %c86 = arith.constant 86 : index
    %257 = memref.load %arg5[%c86] : memref<98xf32, #tpu.memory_space<smem>>
    %c1_103 = arith.constant 1 : index
    %c159_104 = arith.constant 159 : index
    %258 = vector.load %arg7[%c1_103, %c159_104] : memref<2x512xf32, #tpu.memory_space<vmem>>, vector<1x256xf32>
    %259 = vector.broadcast %257 : f32 to vector<1x256xf32>
    %260 = arith.mulf %259, %258 : vector<1x256xf32>
    %261 = arith.addf %256, %260 : vector<1x256xf32>
    %c93_105 = arith.constant 93 : index
    %262 = memref.load %arg5[%c93_105] : memref<98xf32, #tpu.memory_space<smem>>
    %c1_106 = arith.constant 1 : index
    %c175_107 = arith.constant 175 : index
    %263 = vector.load %arg7[%c1_106, %c175_107] : memref<2x512xf32, #tpu.memory_space<vmem>>, vector<1x256xf32>
    %264 = vector.broadcast %262 : f32 to vector<1x256xf32>
    %265 = arith.mulf %264, %263 : vector<1x256xf32>
    %266 = arith.addf %261, %265 : vector<1x256xf32>
    %c2_108 = arith.constant 2 : index
    %c0_109 = arith.constant 0 : index
    %267 = vector.load %arg4[%c2_108, %c0_109] : memref<7x256xf32, #tpu.memory_space<vmem>>, vector<1x256xf32>
    %268 = arith.mulf %267, %266 : vector<1x256xf32>
    %269 = arith.addf %195, %268 : vector<1x256xf32>
    %cst_110 = arith.constant 0.000000e+00 : f32
    %270 = vector.broadcast %cst_110 : f32 to vector<1x256xf32>
    %c3 = arith.constant 3 : index
    %271 = memref.load %arg5[%c3] : memref<98xf32, #tpu.memory_space<smem>>
    %c0_111 = arith.constant 0 : index
    %c80 = arith.constant 80 : index
    %272 = vector.load %arg7[%c0_111, %c80] : memref<2x512xf32, #tpu.memory_space<vmem>>, vector<1x256xf32>
    %273 = vector.broadcast %271 : f32 to vector<1x256xf32>
    %274 = arith.mulf %273, %272 : vector<1x256xf32>
    %275 = arith.addf %270, %274 : vector<1x256xf32>
    %c10 = arith.constant 10 : index
    %276 = memref.load %arg5[%c10] : memref<98xf32, #tpu.memory_space<smem>>
    %c0_112 = arith.constant 0 : index
    %c96 = arith.constant 96 : index
    %277 = vector.load %arg7[%c0_112, %c96] : memref<2x512xf32, #tpu.memory_space<vmem>>, vector<1x256xf32>
    %278 = vector.broadcast %276 : f32 to vector<1x256xf32>
    %279 = arith.mulf %278, %277 : vector<1x256xf32>
    %280 = arith.addf %275, %279 : vector<1x256xf32>
    %c17 = arith.constant 17 : index
    %281 = memref.load %arg5[%c17] : memref<98xf32, #tpu.memory_space<smem>>
    %c0_113 = arith.constant 0 : index
    %c112 = arith.constant 112 : index
    %282 = vector.load %arg7[%c0_113, %c112] : memref<2x512xf32, #tpu.memory_space<vmem>>, vector<1x256xf32>
    %283 = vector.broadcast %281 : f32 to vector<1x256xf32>
    %284 = arith.mulf %283, %282 : vector<1x256xf32>
    %285 = arith.addf %280, %284 : vector<1x256xf32>
    %c24 = arith.constant 24 : index
    %286 = memref.load %arg5[%c24] : memref<98xf32, #tpu.memory_space<smem>>
    %c0_114 = arith.constant 0 : index
    %c128_115 = arith.constant 128 : index
    %287 = vector.load %arg7[%c0_114, %c128_115] : memref<2x512xf32, #tpu.memory_space<vmem>>, vector<1x256xf32>
    %288 = vector.broadcast %286 : f32 to vector<1x256xf32>
    %289 = arith.mulf %288, %287 : vector<1x256xf32>
    %290 = arith.addf %285, %289 : vector<1x256xf32>
    %c31 = arith.constant 31 : index
    %291 = memref.load %arg5[%c31] : memref<98xf32, #tpu.memory_space<smem>>
    %c0_116 = arith.constant 0 : index
    %c144 = arith.constant 144 : index
    %292 = vector.load %arg7[%c0_116, %c144] : memref<2x512xf32, #tpu.memory_space<vmem>>, vector<1x256xf32>
    %293 = vector.broadcast %291 : f32 to vector<1x256xf32>
    %294 = arith.mulf %293, %292 : vector<1x256xf32>
    %295 = arith.addf %290, %294 : vector<1x256xf32>
    %c38 = arith.constant 38 : index
    %296 = memref.load %arg5[%c38] : memref<98xf32, #tpu.memory_space<smem>>
    %c0_117 = arith.constant 0 : index
    %c160 = arith.constant 160 : index
    %297 = vector.load %arg7[%c0_117, %c160] : memref<2x512xf32, #tpu.memory_space<vmem>>, vector<1x256xf32>
    %298 = vector.broadcast %296 : f32 to vector<1x256xf32>
    %299 = arith.mulf %298, %297 : vector<1x256xf32>
    %300 = arith.addf %295, %299 : vector<1x256xf32>
    %c45 = arith.constant 45 : index
    %301 = memref.load %arg5[%c45] : memref<98xf32, #tpu.memory_space<smem>>
    %c0_118 = arith.constant 0 : index
    %c176 = arith.constant 176 : index
    %302 = vector.load %arg7[%c0_118, %c176] : memref<2x512xf32, #tpu.memory_space<vmem>>, vector<1x256xf32>
    %303 = vector.broadcast %301 : f32 to vector<1x256xf32>
    %304 = arith.mulf %303, %302 : vector<1x256xf32>
    %305 = arith.addf %300, %304 : vector<1x256xf32>
    %c52 = arith.constant 52 : index
    %306 = memref.load %arg5[%c52] : memref<98xf32, #tpu.memory_space<smem>>
    %c1_119 = arith.constant 1 : index
    %c80_120 = arith.constant 80 : index
    %307 = vector.load %arg7[%c1_119, %c80_120] : memref<2x512xf32, #tpu.memory_space<vmem>>, vector<1x256xf32>
    %308 = vector.broadcast %306 : f32 to vector<1x256xf32>
    %309 = arith.mulf %308, %307 : vector<1x256xf32>
    %310 = arith.addf %305, %309 : vector<1x256xf32>
    %c59 = arith.constant 59 : index
    %311 = memref.load %arg5[%c59] : memref<98xf32, #tpu.memory_space<smem>>
    %c1_121 = arith.constant 1 : index
    %c96_122 = arith.constant 96 : index
    %312 = vector.load %arg7[%c1_121, %c96_122] : memref<2x512xf32, #tpu.memory_space<vmem>>, vector<1x256xf32>
    %313 = vector.broadcast %311 : f32 to vector<1x256xf32>
    %314 = arith.mulf %313, %312 : vector<1x256xf32>
    %315 = arith.addf %310, %314 : vector<1x256xf32>
    %c66 = arith.constant 66 : index
    %316 = memref.load %arg5[%c66] : memref<98xf32, #tpu.memory_space<smem>>
    %c1_123 = arith.constant 1 : index
    %c112_124 = arith.constant 112 : index
    %317 = vector.load %arg7[%c1_123, %c112_124] : memref<2x512xf32, #tpu.memory_space<vmem>>, vector<1x256xf32>
    %318 = vector.broadcast %316 : f32 to vector<1x256xf32>
    %319 = arith.mulf %318, %317 : vector<1x256xf32>
    %320 = arith.addf %315, %319 : vector<1x256xf32>
    %c73 = arith.constant 73 : index
    %321 = memref.load %arg5[%c73] : memref<98xf32, #tpu.memory_space<smem>>
    %c1_125 = arith.constant 1 : index
    %c128_126 = arith.constant 128 : index
    %322 = vector.load %arg7[%c1_125, %c128_126] : memref<2x512xf32, #tpu.memory_space<vmem>>, vector<1x256xf32>
    %323 = vector.broadcast %321 : f32 to vector<1x256xf32>
    %324 = arith.mulf %323, %322 : vector<1x256xf32>
    %325 = arith.addf %320, %324 : vector<1x256xf32>
    %c80_127 = arith.constant 80 : index
    %326 = memref.load %arg5[%c80_127] : memref<98xf32, #tpu.memory_space<smem>>
    %c1_128 = arith.constant 1 : index
    %c144_129 = arith.constant 144 : index
    %327 = vector.load %arg7[%c1_128, %c144_129] : memref<2x512xf32, #tpu.memory_space<vmem>>, vector<1x256xf32>
    %328 = vector.broadcast %326 : f32 to vector<1x256xf32>
    %329 = arith.mulf %328, %327 : vector<1x256xf32>
    %330 = arith.addf %325, %329 : vector<1x256xf32>
    %c87 = arith.constant 87 : index
    %331 = memref.load %arg5[%c87] : memref<98xf32, #tpu.memory_space<smem>>
    %c1_130 = arith.constant 1 : index
    %c160_131 = arith.constant 160 : index
    %332 = vector.load %arg7[%c1_130, %c160_131] : memref<2x512xf32, #tpu.memory_space<vmem>>, vector<1x256xf32>
    %333 = vector.broadcast %331 : f32 to vector<1x256xf32>
    %334 = arith.mulf %333, %332 : vector<1x256xf32>
    %335 = arith.addf %330, %334 : vector<1x256xf32>
    %c94_132 = arith.constant 94 : index
    %336 = memref.load %arg5[%c94_132] : memref<98xf32, #tpu.memory_space<smem>>
    %c1_133 = arith.constant 1 : index
    %c176_134 = arith.constant 176 : index
    %337 = vector.load %arg7[%c1_133, %c176_134] : memref<2x512xf32, #tpu.memory_space<vmem>>, vector<1x256xf32>
    %338 = vector.broadcast %336 : f32 to vector<1x256xf32>
    %339 = arith.mulf %338, %337 : vector<1x256xf32>
    %340 = arith.addf %335, %339 : vector<1x256xf32>
    %341 = arith.addf %269, %340 : vector<1x256xf32>
    %cst_135 = arith.constant 0.000000e+00 : f32
    %342 = vector.broadcast %cst_135 : f32 to vector<1x256xf32>
    %c4 = arith.constant 4 : index
    %343 = memref.load %arg5[%c4] : memref<98xf32, #tpu.memory_space<smem>>
    %c0_136 = arith.constant 0 : index
    %c81 = arith.constant 81 : index
    %344 = vector.load %arg7[%c0_136, %c81] : memref<2x512xf32, #tpu.memory_space<vmem>>, vector<1x256xf32>
    %345 = vector.broadcast %343 : f32 to vector<1x256xf32>
    %346 = arith.mulf %345, %344 : vector<1x256xf32>
    %347 = arith.addf %342, %346 : vector<1x256xf32>
    %c11 = arith.constant 11 : index
    %348 = memref.load %arg5[%c11] : memref<98xf32, #tpu.memory_space<smem>>
    %c0_137 = arith.constant 0 : index
    %c97 = arith.constant 97 : index
    %349 = vector.load %arg7[%c0_137, %c97] : memref<2x512xf32, #tpu.memory_space<vmem>>, vector<1x256xf32>
    %350 = vector.broadcast %348 : f32 to vector<1x256xf32>
    %351 = arith.mulf %350, %349 : vector<1x256xf32>
    %352 = arith.addf %347, %351 : vector<1x256xf32>
    %c18 = arith.constant 18 : index
    %353 = memref.load %arg5[%c18] : memref<98xf32, #tpu.memory_space<smem>>
    %c0_138 = arith.constant 0 : index
    %c113 = arith.constant 113 : index
    %354 = vector.load %arg7[%c0_138, %c113] : memref<2x512xf32, #tpu.memory_space<vmem>>, vector<1x256xf32>
    %355 = vector.broadcast %353 : f32 to vector<1x256xf32>
    %356 = arith.mulf %355, %354 : vector<1x256xf32>
    %357 = arith.addf %352, %356 : vector<1x256xf32>
    %c25 = arith.constant 25 : index
    %358 = memref.load %arg5[%c25] : memref<98xf32, #tpu.memory_space<smem>>
    %c0_139 = arith.constant 0 : index
    %c129 = arith.constant 129 : index
    %359 = vector.load %arg7[%c0_139, %c129] : memref<2x512xf32, #tpu.memory_space<vmem>>, vector<1x256xf32>
    %360 = vector.broadcast %358 : f32 to vector<1x256xf32>
    %361 = arith.mulf %360, %359 : vector<1x256xf32>
    %362 = arith.addf %357, %361 : vector<1x256xf32>
    %c32 = arith.constant 32 : index
    %363 = memref.load %arg5[%c32] : memref<98xf32, #tpu.memory_space<smem>>
    %c0_140 = arith.constant 0 : index
    %c145 = arith.constant 145 : index
    %364 = vector.load %arg7[%c0_140, %c145] : memref<2x512xf32, #tpu.memory_space<vmem>>, vector<1x256xf32>
    %365 = vector.broadcast %363 : f32 to vector<1x256xf32>
    %366 = arith.mulf %365, %364 : vector<1x256xf32>
    %367 = arith.addf %362, %366 : vector<1x256xf32>
    %c39 = arith.constant 39 : index
    %368 = memref.load %arg5[%c39] : memref<98xf32, #tpu.memory_space<smem>>
    %c0_141 = arith.constant 0 : index
    %c161 = arith.constant 161 : index
    %369 = vector.load %arg7[%c0_141, %c161] : memref<2x512xf32, #tpu.memory_space<vmem>>, vector<1x256xf32>
    %370 = vector.broadcast %368 : f32 to vector<1x256xf32>
    %371 = arith.mulf %370, %369 : vector<1x256xf32>
    %372 = arith.addf %367, %371 : vector<1x256xf32>
    %c46 = arith.constant 46 : index
    %373 = memref.load %arg5[%c46] : memref<98xf32, #tpu.memory_space<smem>>
    %c0_142 = arith.constant 0 : index
    %c177 = arith.constant 177 : index
    %374 = vector.load %arg7[%c0_142, %c177] : memref<2x512xf32, #tpu.memory_space<vmem>>, vector<1x256xf32>
    %375 = vector.broadcast %373 : f32 to vector<1x256xf32>
    %376 = arith.mulf %375, %374 : vector<1x256xf32>
    %377 = arith.addf %372, %376 : vector<1x256xf32>
    %c53 = arith.constant 53 : index
    %378 = memref.load %arg5[%c53] : memref<98xf32, #tpu.memory_space<smem>>
    %c1_143 = arith.constant 1 : index
    %c81_144 = arith.constant 81 : index
    %379 = vector.load %arg7[%c1_143, %c81_144] : memref<2x512xf32, #tpu.memory_space<vmem>>, vector<1x256xf32>
    %380 = vector.broadcast %378 : f32 to vector<1x256xf32>
    %381 = arith.mulf %380, %379 : vector<1x256xf32>
    %382 = arith.addf %377, %381 : vector<1x256xf32>
    %c60 = arith.constant 60 : index
    %383 = memref.load %arg5[%c60] : memref<98xf32, #tpu.memory_space<smem>>
    %c1_145 = arith.constant 1 : index
    %c97_146 = arith.constant 97 : index
    %384 = vector.load %arg7[%c1_145, %c97_146] : memref<2x512xf32, #tpu.memory_space<vmem>>, vector<1x256xf32>
    %385 = vector.broadcast %383 : f32 to vector<1x256xf32>
    %386 = arith.mulf %385, %384 : vector<1x256xf32>
    %387 = arith.addf %382, %386 : vector<1x256xf32>
    %c67 = arith.constant 67 : index
    %388 = memref.load %arg5[%c67] : memref<98xf32, #tpu.memory_space<smem>>
    %c1_147 = arith.constant 1 : index
    %c113_148 = arith.constant 113 : index
    %389 = vector.load %arg7[%c1_147, %c113_148] : memref<2x512xf32, #tpu.memory_space<vmem>>, vector<1x256xf32>
    %390 = vector.broadcast %388 : f32 to vector<1x256xf32>
    %391 = arith.mulf %390, %389 : vector<1x256xf32>
    %392 = arith.addf %387, %391 : vector<1x256xf32>
    %c74 = arith.constant 74 : index
    %393 = memref.load %arg5[%c74] : memref<98xf32, #tpu.memory_space<smem>>
    %c1_149 = arith.constant 1 : index
    %c129_150 = arith.constant 129 : index
    %394 = vector.load %arg7[%c1_149, %c129_150] : memref<2x512xf32, #tpu.memory_space<vmem>>, vector<1x256xf32>
    %395 = vector.broadcast %393 : f32 to vector<1x256xf32>
    %396 = arith.mulf %395, %394 : vector<1x256xf32>
    %397 = arith.addf %392, %396 : vector<1x256xf32>
    %c81_151 = arith.constant 81 : index
    %398 = memref.load %arg5[%c81_151] : memref<98xf32, #tpu.memory_space<smem>>
    %c1_152 = arith.constant 1 : index
    %c145_153 = arith.constant 145 : index
    %399 = vector.load %arg7[%c1_152, %c145_153] : memref<2x512xf32, #tpu.memory_space<vmem>>, vector<1x256xf32>
    %400 = vector.broadcast %398 : f32 to vector<1x256xf32>
    %401 = arith.mulf %400, %399 : vector<1x256xf32>
    %402 = arith.addf %397, %401 : vector<1x256xf32>
    %c88 = arith.constant 88 : index
    %403 = memref.load %arg5[%c88] : memref<98xf32, #tpu.memory_space<smem>>
    %c1_154 = arith.constant 1 : index
    %c161_155 = arith.constant 161 : index
    %404 = vector.load %arg7[%c1_154, %c161_155] : memref<2x512xf32, #tpu.memory_space<vmem>>, vector<1x256xf32>
    %405 = vector.broadcast %403 : f32 to vector<1x256xf32>
    %406 = arith.mulf %405, %404 : vector<1x256xf32>
    %407 = arith.addf %402, %406 : vector<1x256xf32>
    %c95_156 = arith.constant 95 : index
    %408 = memref.load %arg5[%c95_156] : memref<98xf32, #tpu.memory_space<smem>>
    %c1_157 = arith.constant 1 : index
    %c177_158 = arith.constant 177 : index
    %409 = vector.load %arg7[%c1_157, %c177_158] : memref<2x512xf32, #tpu.memory_space<vmem>>, vector<1x256xf32>
    %410 = vector.broadcast %408 : f32 to vector<1x256xf32>
    %411 = arith.mulf %410, %409 : vector<1x256xf32>
    %412 = arith.addf %407, %411 : vector<1x256xf32>
    %c4_159 = arith.constant 4 : index
    %c0_160 = arith.constant 0 : index
    %413 = vector.load %arg4[%c4_159, %c0_160] : memref<7x256xf32, #tpu.memory_space<vmem>>, vector<1x256xf32>
    %414 = arith.mulf %413, %412 : vector<1x256xf32>
    %415 = arith.addf %341, %414 : vector<1x256xf32>
    %cst_161 = arith.constant 0.000000e+00 : f32
    %416 = vector.broadcast %cst_161 : f32 to vector<1x256xf32>
    %c5 = arith.constant 5 : index
    %417 = memref.load %arg5[%c5] : memref<98xf32, #tpu.memory_space<smem>>
    %c0_162 = arith.constant 0 : index
    %c82 = arith.constant 82 : index
    %418 = vector.load %arg7[%c0_162, %c82] : memref<2x512xf32, #tpu.memory_space<vmem>>, vector<1x256xf32>
    %419 = vector.broadcast %417 : f32 to vector<1x256xf32>
    %420 = arith.mulf %419, %418 : vector<1x256xf32>
    %421 = arith.addf %416, %420 : vector<1x256xf32>
    %c12 = arith.constant 12 : index
    %422 = memref.load %arg5[%c12] : memref<98xf32, #tpu.memory_space<smem>>
    %c0_163 = arith.constant 0 : index
    %c98 = arith.constant 98 : index
    %423 = vector.load %arg7[%c0_163, %c98] : memref<2x512xf32, #tpu.memory_space<vmem>>, vector<1x256xf32>
    %424 = vector.broadcast %422 : f32 to vector<1x256xf32>
    %425 = arith.mulf %424, %423 : vector<1x256xf32>
    %426 = arith.addf %421, %425 : vector<1x256xf32>
    %c19 = arith.constant 19 : index
    %427 = memref.load %arg5[%c19] : memref<98xf32, #tpu.memory_space<smem>>
    %c0_164 = arith.constant 0 : index
    %c114 = arith.constant 114 : index
    %428 = vector.load %arg7[%c0_164, %c114] : memref<2x512xf32, #tpu.memory_space<vmem>>, vector<1x256xf32>
    %429 = vector.broadcast %427 : f32 to vector<1x256xf32>
    %430 = arith.mulf %429, %428 : vector<1x256xf32>
    %431 = arith.addf %426, %430 : vector<1x256xf32>
    %c26 = arith.constant 26 : index
    %432 = memref.load %arg5[%c26] : memref<98xf32, #tpu.memory_space<smem>>
    %c0_165 = arith.constant 0 : index
    %c130 = arith.constant 130 : index
    %433 = vector.load %arg7[%c0_165, %c130] : memref<2x512xf32, #tpu.memory_space<vmem>>, vector<1x256xf32>
    %434 = vector.broadcast %432 : f32 to vector<1x256xf32>
    %435 = arith.mulf %434, %433 : vector<1x256xf32>
    %436 = arith.addf %431, %435 : vector<1x256xf32>
    %c33 = arith.constant 33 : index
    %437 = memref.load %arg5[%c33] : memref<98xf32, #tpu.memory_space<smem>>
    %c0_166 = arith.constant 0 : index
    %c146 = arith.constant 146 : index
    %438 = vector.load %arg7[%c0_166, %c146] : memref<2x512xf32, #tpu.memory_space<vmem>>, vector<1x256xf32>
    %439 = vector.broadcast %437 : f32 to vector<1x256xf32>
    %440 = arith.mulf %439, %438 : vector<1x256xf32>
    %441 = arith.addf %436, %440 : vector<1x256xf32>
    %c40 = arith.constant 40 : index
    %442 = memref.load %arg5[%c40] : memref<98xf32, #tpu.memory_space<smem>>
    %c0_167 = arith.constant 0 : index
    %c162 = arith.constant 162 : index
    %443 = vector.load %arg7[%c0_167, %c162] : memref<2x512xf32, #tpu.memory_space<vmem>>, vector<1x256xf32>
    %444 = vector.broadcast %442 : f32 to vector<1x256xf32>
    %445 = arith.mulf %444, %443 : vector<1x256xf32>
    %446 = arith.addf %441, %445 : vector<1x256xf32>
    %c47 = arith.constant 47 : index
    %447 = memref.load %arg5[%c47] : memref<98xf32, #tpu.memory_space<smem>>
    %c0_168 = arith.constant 0 : index
    %c178 = arith.constant 178 : index
    %448 = vector.load %arg7[%c0_168, %c178] : memref<2x512xf32, #tpu.memory_space<vmem>>, vector<1x256xf32>
    %449 = vector.broadcast %447 : f32 to vector<1x256xf32>
    %450 = arith.mulf %449, %448 : vector<1x256xf32>
    %451 = arith.addf %446, %450 : vector<1x256xf32>
    %c54 = arith.constant 54 : index
    %452 = memref.load %arg5[%c54] : memref<98xf32, #tpu.memory_space<smem>>
    %c1_169 = arith.constant 1 : index
    %c82_170 = arith.constant 82 : index
    %453 = vector.load %arg7[%c1_169, %c82_170] : memref<2x512xf32, #tpu.memory_space<vmem>>, vector<1x256xf32>
    %454 = vector.broadcast %452 : f32 to vector<1x256xf32>
    %455 = arith.mulf %454, %453 : vector<1x256xf32>
    %456 = arith.addf %451, %455 : vector<1x256xf32>
    %c61 = arith.constant 61 : index
    %457 = memref.load %arg5[%c61] : memref<98xf32, #tpu.memory_space<smem>>
    %c1_171 = arith.constant 1 : index
    %c98_172 = arith.constant 98 : index
    %458 = vector.load %arg7[%c1_171, %c98_172] : memref<2x512xf32, #tpu.memory_space<vmem>>, vector<1x256xf32>
    %459 = vector.broadcast %457 : f32 to vector<1x256xf32>
    %460 = arith.mulf %459, %458 : vector<1x256xf32>
    %461 = arith.addf %456, %460 : vector<1x256xf32>
    %c68 = arith.constant 68 : index
    %462 = memref.load %arg5[%c68] : memref<98xf32, #tpu.memory_space<smem>>
    %c1_173 = arith.constant 1 : index
    %c114_174 = arith.constant 114 : index
    %463 = vector.load %arg7[%c1_173, %c114_174] : memref<2x512xf32, #tpu.memory_space<vmem>>, vector<1x256xf32>
    %464 = vector.broadcast %462 : f32 to vector<1x256xf32>
    %465 = arith.mulf %464, %463 : vector<1x256xf32>
    %466 = arith.addf %461, %465 : vector<1x256xf32>
    %c75 = arith.constant 75 : index
    %467 = memref.load %arg5[%c75] : memref<98xf32, #tpu.memory_space<smem>>
    %c1_175 = arith.constant 1 : index
    %c130_176 = arith.constant 130 : index
    %468 = vector.load %arg7[%c1_175, %c130_176] : memref<2x512xf32, #tpu.memory_space<vmem>>, vector<1x256xf32>
    %469 = vector.broadcast %467 : f32 to vector<1x256xf32>
    %470 = arith.mulf %469, %468 : vector<1x256xf32>
    %471 = arith.addf %466, %470 : vector<1x256xf32>
    %c82_177 = arith.constant 82 : index
    %472 = memref.load %arg5[%c82_177] : memref<98xf32, #tpu.memory_space<smem>>
    %c1_178 = arith.constant 1 : index
    %c146_179 = arith.constant 146 : index
    %473 = vector.load %arg7[%c1_178, %c146_179] : memref<2x512xf32, #tpu.memory_space<vmem>>, vector<1x256xf32>
    %474 = vector.broadcast %472 : f32 to vector<1x256xf32>
    %475 = arith.mulf %474, %473 : vector<1x256xf32>
    %476 = arith.addf %471, %475 : vector<1x256xf32>
    %c89 = arith.constant 89 : index
    %477 = memref.load %arg5[%c89] : memref<98xf32, #tpu.memory_space<smem>>
    %c1_180 = arith.constant 1 : index
    %c162_181 = arith.constant 162 : index
    %478 = vector.load %arg7[%c1_180, %c162_181] : memref<2x512xf32, #tpu.memory_space<vmem>>, vector<1x256xf32>
    %479 = vector.broadcast %477 : f32 to vector<1x256xf32>
    %480 = arith.mulf %479, %478 : vector<1x256xf32>
    %481 = arith.addf %476, %480 : vector<1x256xf32>
    %c96_182 = arith.constant 96 : index
    %482 = memref.load %arg5[%c96_182] : memref<98xf32, #tpu.memory_space<smem>>
    %c1_183 = arith.constant 1 : index
    %c178_184 = arith.constant 178 : index
    %483 = vector.load %arg7[%c1_183, %c178_184] : memref<2x512xf32, #tpu.memory_space<vmem>>, vector<1x256xf32>
    %484 = vector.broadcast %482 : f32 to vector<1x256xf32>
    %485 = arith.mulf %484, %483 : vector<1x256xf32>
    %486 = arith.addf %481, %485 : vector<1x256xf32>
    %c5_185 = arith.constant 5 : index
    %c0_186 = arith.constant 0 : index
    %487 = vector.load %arg4[%c5_185, %c0_186] : memref<7x256xf32, #tpu.memory_space<vmem>>, vector<1x256xf32>
    %488 = arith.mulf %487, %486 : vector<1x256xf32>
    %489 = arith.addf %415, %488 : vector<1x256xf32>
    %cst_187 = arith.constant 0.000000e+00 : f32
    %490 = vector.broadcast %cst_187 : f32 to vector<1x256xf32>
    %c6 = arith.constant 6 : index
    %491 = memref.load %arg5[%c6] : memref<98xf32, #tpu.memory_space<smem>>
    %c0_188 = arith.constant 0 : index
    %c83 = arith.constant 83 : index
    %492 = vector.load %arg7[%c0_188, %c83] : memref<2x512xf32, #tpu.memory_space<vmem>>, vector<1x256xf32>
    %493 = vector.broadcast %491 : f32 to vector<1x256xf32>
    %494 = arith.mulf %493, %492 : vector<1x256xf32>
    %495 = arith.addf %490, %494 : vector<1x256xf32>
    %c13 = arith.constant 13 : index
    %496 = memref.load %arg5[%c13] : memref<98xf32, #tpu.memory_space<smem>>
    %c0_189 = arith.constant 0 : index
    %c99 = arith.constant 99 : index
    %497 = vector.load %arg7[%c0_189, %c99] : memref<2x512xf32, #tpu.memory_space<vmem>>, vector<1x256xf32>
    %498 = vector.broadcast %496 : f32 to vector<1x256xf32>
    %499 = arith.mulf %498, %497 : vector<1x256xf32>
    %500 = arith.addf %495, %499 : vector<1x256xf32>
    %c20 = arith.constant 20 : index
    %501 = memref.load %arg5[%c20] : memref<98xf32, #tpu.memory_space<smem>>
    %c0_190 = arith.constant 0 : index
    %c115 = arith.constant 115 : index
    %502 = vector.load %arg7[%c0_190, %c115] : memref<2x512xf32, #tpu.memory_space<vmem>>, vector<1x256xf32>
    %503 = vector.broadcast %501 : f32 to vector<1x256xf32>
    %504 = arith.mulf %503, %502 : vector<1x256xf32>
    %505 = arith.addf %500, %504 : vector<1x256xf32>
    %c27 = arith.constant 27 : index
    %506 = memref.load %arg5[%c27] : memref<98xf32, #tpu.memory_space<smem>>
    %c0_191 = arith.constant 0 : index
    %c131 = arith.constant 131 : index
    %507 = vector.load %arg7[%c0_191, %c131] : memref<2x512xf32, #tpu.memory_space<vmem>>, vector<1x256xf32>
    %508 = vector.broadcast %506 : f32 to vector<1x256xf32>
    %509 = arith.mulf %508, %507 : vector<1x256xf32>
    %510 = arith.addf %505, %509 : vector<1x256xf32>
    %c34 = arith.constant 34 : index
    %511 = memref.load %arg5[%c34] : memref<98xf32, #tpu.memory_space<smem>>
    %c0_192 = arith.constant 0 : index
    %c147 = arith.constant 147 : index
    %512 = vector.load %arg7[%c0_192, %c147] : memref<2x512xf32, #tpu.memory_space<vmem>>, vector<1x256xf32>
    %513 = vector.broadcast %511 : f32 to vector<1x256xf32>
    %514 = arith.mulf %513, %512 : vector<1x256xf32>
    %515 = arith.addf %510, %514 : vector<1x256xf32>
    %c41 = arith.constant 41 : index
    %516 = memref.load %arg5[%c41] : memref<98xf32, #tpu.memory_space<smem>>
    %c0_193 = arith.constant 0 : index
    %c163 = arith.constant 163 : index
    %517 = vector.load %arg7[%c0_193, %c163] : memref<2x512xf32, #tpu.memory_space<vmem>>, vector<1x256xf32>
    %518 = vector.broadcast %516 : f32 to vector<1x256xf32>
    %519 = arith.mulf %518, %517 : vector<1x256xf32>
    %520 = arith.addf %515, %519 : vector<1x256xf32>
    %c48 = arith.constant 48 : index
    %521 = memref.load %arg5[%c48] : memref<98xf32, #tpu.memory_space<smem>>
    %c0_194 = arith.constant 0 : index
    %c179 = arith.constant 179 : index
    %522 = vector.load %arg7[%c0_194, %c179] : memref<2x512xf32, #tpu.memory_space<vmem>>, vector<1x256xf32>
    %523 = vector.broadcast %521 : f32 to vector<1x256xf32>
    %524 = arith.mulf %523, %522 : vector<1x256xf32>
    %525 = arith.addf %520, %524 : vector<1x256xf32>
    %c55 = arith.constant 55 : index
    %526 = memref.load %arg5[%c55] : memref<98xf32, #tpu.memory_space<smem>>
    %c1_195 = arith.constant 1 : index
    %c83_196 = arith.constant 83 : index
    %527 = vector.load %arg7[%c1_195, %c83_196] : memref<2x512xf32, #tpu.memory_space<vmem>>, vector<1x256xf32>
    %528 = vector.broadcast %526 : f32 to vector<1x256xf32>
    %529 = arith.mulf %528, %527 : vector<1x256xf32>
    %530 = arith.addf %525, %529 : vector<1x256xf32>
    %c62 = arith.constant 62 : index
    %531 = memref.load %arg5[%c62] : memref<98xf32, #tpu.memory_space<smem>>
    %c1_197 = arith.constant 1 : index
    %c99_198 = arith.constant 99 : index
    %532 = vector.load %arg7[%c1_197, %c99_198] : memref<2x512xf32, #tpu.memory_space<vmem>>, vector<1x256xf32>
    %533 = vector.broadcast %531 : f32 to vector<1x256xf32>
    %534 = arith.mulf %533, %532 : vector<1x256xf32>
    %535 = arith.addf %530, %534 : vector<1x256xf32>
    %c69 = arith.constant 69 : index
    %536 = memref.load %arg5[%c69] : memref<98xf32, #tpu.memory_space<smem>>
    %c1_199 = arith.constant 1 : index
    %c115_200 = arith.constant 115 : index
    %537 = vector.load %arg7[%c1_199, %c115_200] : memref<2x512xf32, #tpu.memory_space<vmem>>, vector<1x256xf32>
    %538 = vector.broadcast %536 : f32 to vector<1x256xf32>
    %539 = arith.mulf %538, %537 : vector<1x256xf32>
    %540 = arith.addf %535, %539 : vector<1x256xf32>
    %c76 = arith.constant 76 : index
    %541 = memref.load %arg5[%c76] : memref<98xf32, #tpu.memory_space<smem>>
    %c1_201 = arith.constant 1 : index
    %c131_202 = arith.constant 131 : index
    %542 = vector.load %arg7[%c1_201, %c131_202] : memref<2x512xf32, #tpu.memory_space<vmem>>, vector<1x256xf32>
    %543 = vector.broadcast %541 : f32 to vector<1x256xf32>
    %544 = arith.mulf %543, %542 : vector<1x256xf32>
    %545 = arith.addf %540, %544 : vector<1x256xf32>
    %c83_203 = arith.constant 83 : index
    %546 = memref.load %arg5[%c83_203] : memref<98xf32, #tpu.memory_space<smem>>
    %c1_204 = arith.constant 1 : index
    %c147_205 = arith.constant 147 : index
    %547 = vector.load %arg7[%c1_204, %c147_205] : memref<2x512xf32, #tpu.memory_space<vmem>>, vector<1x256xf32>
    %548 = vector.broadcast %546 : f32 to vector<1x256xf32>
    %549 = arith.mulf %548, %547 : vector<1x256xf32>
    %550 = arith.addf %545, %549 : vector<1x256xf32>
    %c90 = arith.constant 90 : index
    %551 = memref.load %arg5[%c90] : memref<98xf32, #tpu.memory_space<smem>>
    %c1_206 = arith.constant 1 : index
    %c163_207 = arith.constant 163 : index
    %552 = vector.load %arg7[%c1_206, %c163_207] : memref<2x512xf32, #tpu.memory_space<vmem>>, vector<1x256xf32>
    %553 = vector.broadcast %551 : f32 to vector<1x256xf32>
    %554 = arith.mulf %553, %552 : vector<1x256xf32>
    %555 = arith.addf %550, %554 : vector<1x256xf32>
    %c97_208 = arith.constant 97 : index
    %556 = memref.load %arg5[%c97_208] : memref<98xf32, #tpu.memory_space<smem>>
    %c1_209 = arith.constant 1 : index
    %c179_210 = arith.constant 179 : index
    %557 = vector.load %arg7[%c1_209, %c179_210] : memref<2x512xf32, #tpu.memory_space<vmem>>, vector<1x256xf32>
    %558 = vector.broadcast %556 : f32 to vector<1x256xf32>
    %559 = arith.mulf %558, %557 : vector<1x256xf32>
    %560 = arith.addf %555, %559 : vector<1x256xf32>
    %c6_211 = arith.constant 6 : index
    %c0_212 = arith.constant 0 : index
    %561 = vector.load %arg4[%c6_211, %c0_212] : memref<7x256xf32, #tpu.memory_space<vmem>>, vector<1x256xf32>
    %562 = arith.mulf %561, %560 : vector<1x256xf32>
    %563 = arith.addf %489, %562 : vector<1x256xf32>
    %564 = arith.negf %563 : vector<1x256xf32>
    %565 = math.exp %564 : vector<1x256xf32>
    %cst_213 = arith.constant 1.000000e+00 : f32
    %566 = vector.broadcast %cst_213 : f32 to vector<1x256xf32>
    %567 = arith.addf %566, %565 : vector<1x256xf32>
    %568 = arith.divf %566, %567 : vector<1x256xf32>
    %c0_i32_214 = arith.constant 0 : i32
    %c4_i32_215 = arith.constant 4 : i32
    %569 = arith.muli %c0_i32_214, %c4_i32_215 : i32
    %570 = tpu.assume_multiple %569, 4 : i32
    %c0_216 = arith.constant 0 : index
    %571 = arith.index_cast %570 : i32 to index
    %c0_217 = arith.constant 0 : index
    %572 = vector.load %arg1[%c0_216, %571, %c0_217] : memref<1x4x256xf32, #tpu.memory_space<vmem>>, vector<1x4x256xf32>
    %573 = vector.shape_cast %572 : vector<1x4x256xf32> to vector<4x256xf32>
    %574 = arith.index_cast %570 : i32 to index
    %c0_218 = arith.constant 0 : index
    %575 = vector.load %arg8[%574, %c0_218] : memref<4x1xf32, #tpu.memory_space<vmem>>, vector<4x1xf32>
    %576 = vector.broadcast %575 : vector<4x1xf32> to vector<4x256xf32>
    %577 = arith.mulf %573, %576 : vector<4x256xf32>
    %578 = vector.broadcast %568 : vector<1x256xf32> to vector<4x256xf32>
    %579 = arith.mulf %577, %578 : vector<4x256xf32>
    %c0_219 = arith.constant 0 : index
    %580 = arith.index_cast %570 : i32 to index
    %c0_220 = arith.constant 0 : index
    %581 = vector.load %arg6[%c0_219, %580, %c0_220] : memref<1x4x256xf32, #tpu.memory_space<vmem>>, vector<1x4x256xf32>
    %582 = vector.shape_cast %581 : vector<1x4x256xf32> to vector<4x256xf32>
    %583 = vector.shape_cast %579 : vector<4x256xf32> to vector<1x4x256xf32>
    tpu.vector_store %arg6[%c0_219, %580, %c0_220], %583 {strides = array<i32>} : memref<1x4x256xf32, #tpu.memory_space<vmem>>, vector<1x4x256xf32>,
    %c1_i32_221 = arith.constant 1 : i32
    return
  }
  func.func @transform_0(%arg0: i32) -> (i32, i32, i32) {
    %c0_i32 = arith.constant 0 : i32
    %c0_i32_0 = arith.constant 0 : i32
    %c0_i32_1 = arith.constant 0 : i32
    return %arg0, %c0_i32, %c0_i32_0 : i32, i32, i32
  }
  func.func @transform_1(%arg0: i32) -> (i32, i32) {
    %c0_i32 = arith.constant 0 : i32
    %c0_i32_0 = arith.constant 0 : i32
    %c0_i32_1 = arith.constant 0 : i32
    return %c0_i32, %c0_i32_0 : i32, i32
  }
  func.func @transform_2(%arg0: i32) -> (i32, i32) {
    %c0_i32 = arith.constant 0 : i32
    %c0_i32_0 = arith.constant 0 : i32
    %c0_i32_1 = arith.constant 0 : i32
    return %c0_i32, %c0_i32_0 : i32, i32
  }
  func.func @transform_3(%arg0: i32) -> (i32, i32) {
    %c0_i32 = arith.constant 0 : i32
    %c0_i32_0 = arith.constant 0 : i32
    %c0_i32_1 = arith.constant 0 : i32
    return %c0_i32, %c0_i32_0 : i32, i32
  }
  func.func @transform_4(%arg0: i32) -> i32 {
    %c0_i32 = arith.constant 0 : i32
    %c0_i32_0 = arith.constant 0 : i32
    return %c0_i32 : i32
  }
  func.func @transform_5(%arg0: i32) -> (i32, i32, i32) {
    %c0_i32 = arith.constant 0 : i32
    %c0_i32_0 = arith.constant 0 : i32
    %c0_i32_1 = arith.constant 0 : i32
    return %arg0, %c0_i32, %c0_i32_0 : i32, i32, i32
  }
}

</mosaic_0001>

<llo_original>
// kernel: tpu_custom_call.1
$region0: #{tpu_custom_call.1}
  #allocation0 [shape = 'u32[]', space=smem, size = 0x4, offset = 0x4, fixed_abs, tag = 'smem constant byte address 0x4 - core index']
  #allocation1 [shape = 'u32[144,128]{1,0:T(1,128)}', space=vmem, size = 0x12000, scoped, tag = 'internal scratch']
  #allocation2 [shape = 'f32[2,512]{1,0:T(2,128)}', space=vmem, size = 0x1000, scoped, tag = 'scratch operand']
  #allocation3 [shape = 'f32[4,1]{1,0:T(4,128)}', space=vmem, size = 0x800, scoped, tag = 'scratch operand']
  %s0 = inlined_call_operand.hbm [shape: f32[2,4,256], index: 0, kind: input, shape index: {}]
  %s1 = inlined_call_operand.hbm [shape: f32[4,4], index: 1, kind: input, shape index: {}]
  %s2 = inlined_call_operand.vmem [shape: f32[4,1], index: 2, kind: input, shape index: {}]
  %s3 = inlined_call_operand.vmem [shape: f32[7,256], index: 3, kind: input, shape index: {}]
  %s4 = inlined_call_operand.vmem [shape: f32[98], index: 4, kind: input, shape index: {}]
  %s5 = inlined_call_operand.hbm [shape: f32[2,4,256], index: 5, kind: output, shape index: {}]
  %s6 = sld [smem:[#allocation0]]
  $region65: #{tpu_custom_call.1} parent=0
    _
  %s8 = ssub.s32 1, %s6
  %s9 = scalar_select 0, %s8, %s6
  $region1: #{tpu_custom_call.1} parent=0
    #allocation4 [shape = 'u8[8192]{0}', space=vmem, size = 0x2000, scoped, tag = 'input window, operand 0']
    #allocation5 [shape = 's32[2]{0}', space=sflag, size = 0x8, scoped, tag = 'scoped memory for tpu_custom_call.1']
    #allocation6 [shape = 's32[2]{0}', space=sflag, size = 0x8, scoped, tag = 'scoped memory for tpu_custom_call.1']
    #allocation7 [shape = 's32[2]{0}', space=sflag, size = 0x8, scoped, tag = 'scoped memory for tpu_custom_call.1']
    #allocation8 [shape = 'u8[2048]{0}', space=vmem, size = 0x800, scoped, tag = 'input window, operand 1, single buffered']
    #allocation9 [shape = 's32[1]{0}', space=sflag, size = 0x4, scoped, tag = 'scoped memory for tpu_custom_call.1']
    #allocation10 [shape = 'u8[512]{0}', space=smem, size = 0x200, scoped, tag = 'input window, operand 4, single buffered']
    #allocation11 [shape = 'u8[8192]{0}', space=vmem, size = 0x2000, scoped, tag = 'output window, operand 0']
    %10 = vsyncpa [#allocation5], 0
    %s11 = scalar_lea.sflag [#allocation5], 1
    %12 = vsyncpa %s11, 0
    %13 = vsyncpa [#allocation9], 0
    %14 = vsyncpa [#allocation7], 0
    %15 = vsyncpa [#allocation6], 0
    %s16 = scalar_lea.sflag [#allocation6], 1
    %17 = vsyncpa %s16, 0
    loop: start=0, step=1, limit=4
    $region2: #{tpu_custom_call.1} parent=1 // loop_pre_header
      _
    $region3: #{tpu_custom_call.1} parent=1 // loop_header
      %s19 = sphi 0, %s23
      %p20 = scmp.ge.s32.totalorder %s19, 4
      %s29 = sphi 0, %s31
      %s32 = sphi 0, %s29
      %s33 = sphi 0, %s32
      %s49 = sphi 0, %s33
      %s53 = sphi 0, %s53
      %s55 = sphi 0, %s53
      %s56 = sphi 0, %s55
      %s70 = sphi 0, %s56
      %s74 = sphi 0, %s74
      %s76 = sphi 0, %s74
      %s77 = sphi 0, %s76
      %s91 = sphi 0, %s77
      %s95 = sphi 0, %s95
      %s97 = sphi 0, %s95
      %s98 = sphi 0, %s97
      %s112 = sphi 0, %s98
      %s116 = sphi 0, %s116
      %s118 = sphi 0, %s116
      %s119 = sphi 0, %s118
      %s133 = sphi 0, %s119
      %s139 = sphi 0, %s141
      %s142 = sphi 0, %s139
      %s143 = sphi 0, %s142
      %s159 = sphi 0, %s143
    $region4: #{tpu_custom_call.1} parent=1 // loop_header_branch
      %22 = sbr.rel (%p20) target = $region8
    $region5: #{tpu_custom_call.1} parent=1 // loop_body
      %s24 = ssub.s32 %s19, 1
      %s25 = ssub.s32 %s19, 2
      %s26 = sadd.s32 %s19, 1
      %s27 = ssub.s32 %s19, %s26
      %p28 = scmp.eq.s32.totalorder %s27, 0
      %s30 = sadd.s32 %s29, 1
      %s31 = scalar_select %p28, %s29, %s30
      %p34 = pneg %p28
      %p35 = scmp.eq.s32.totalorder %s19, 1
      %p36 = por %p34, %p35
      %p37 = scmp.ne.s32.totalorder %s29, %s32
      %p38 = scmp.eq.s32.totalorder %s19, 0
      %p39 = por %p37, %p38
      %p40 = scmp.ne.s32.totalorder %s29, %s32
      %p41 = scmp.eq.s32.totalorder %s24, 1
      %p42 = por %p40, %p41
      %p43 = scmp.ne.s32.totalorder %s32, %s33
      %p44 = scmp.eq.s32.totalorder %s24, 0
      %p45 = por %p43, %p44
      %p46 = scmp.ne.s32.totalorder %s32, %s33
      %p47 = scmp.eq.s32.totalorder %s25, 1
      %p48 = por %p46, %p47
      %p50 = scmp.ne.s32.totalorder %s33, %s49
      %p51 = scmp.eq.s32.totalorder %s25, 0
      %p52 = por %p50, %p51
      %s54 = sadd.s32 %s53, 1
      %p57 = scmp.eq.s32.totalorder %s19, 1
      %p58 = scmp.ne.s32.totalorder %s53, %s55
      %p59 = scmp.eq.s32.totalorder %s19, 0
      %p60 = por %p58, %p59
      %p61 = scmp.ne.s32.totalorder %s53, %s55
      %p62 = scmp.eq.s32.totalorder %s24, 1
      %p63 = por %p61, %p62
      %p64 = scmp.ne.s32.totalorder %s55, %s56
      %p65 = scmp.eq.s32.totalorder %s24, 0
      %p66 = por %p64, %p65
      %p67 = scmp.ne.s32.totalorder %s55, %s56
      %p68 = scmp.eq.s32.totalorder %s25, 1
      %p69 = por %p67, %p68
      %p71 = scmp.ne.s32.totalorder %s56, %s70
      %p72 = scmp.eq.s32.totalorder %s25, 0
      %p73 = por %p71, %p72
      %s75 = sadd.s32 %s74, 1
      %p78 = scmp.eq.s32.totalorder %s19, 1
      %p79 = scmp.ne.s32.totalorder %s74, %s76
      %p80 = scmp.eq.s32.totalorder %s19, 0
      %p81 = por %p79, %p80
      %p82 = scmp.ne.s32.totalorder %s74, %s76
      %p83 = scmp.eq.s32.totalorder %s24, 1
      %p84 = por %p82, %p83
      %p85 = scmp.ne.s32.totalorder %s76, %s77
      %p86 = scmp.eq.s32.totalorder %s24, 0
      %p87 = por %p85, %p86
      %p88 = scmp.ne.s32.totalorder %s76, %s77
      %p89 = scmp.eq.s32.totalorder %s25, 1
      %p90 = por %p88, %p89
      %p92 = scmp.ne.s32.totalorder %s77, %s91
      %p93 = scmp.eq.s32.totalorder %s25, 0
      %p94 = por %p92, %p93
      %s96 = sadd.s32 %s95, 1
      %p99 = scmp.eq.s32.totalorder %s19, 1
      %p100 = scmp.ne.s32.totalorder %s95, %s97
      %p101 = scmp.eq.s32.totalorder %s19, 0
      %p102 = por %p100, %p101
      %p103 = scmp.ne.s32.totalorder %s95, %s97
      %p104 = scmp.eq.s32.totalorder %s24, 1
      %p105 = por %p103, %p104
      %p106 = scmp.ne.s32.totalorder %s97, %s98
      %p107 = scmp.eq.s32.totalorder %s24, 0
      %p108 = por %p106, %p107
      %p109 = scmp.ne.s32.totalorder %s97, %s98
      %p110 = scmp.eq.s32.totalorder %s25, 1
      %p111 = por %p109, %p110
      %p113 = scmp.ne.s32.totalorder %s98, %s112
      %p114 = scmp.eq.s32.totalorder %s25, 0
      %p115 = por %p113, %p114
      %s117 = sadd.s32 %s116, 1
      %p120 = scmp.eq.s32.totalorder %s19, 1
      %p121 = scmp.ne.s32.totalorder %s116, %s118
      %p122 = scmp.eq.s32.totalorder %s19, 0
      %p123 = por %p121, %p122
      %p124 = scmp.ne.s32.totalorder %s116, %s118
      %p125 = scmp.eq.s32.totalorder %s24, 1
      %p126 = por %p124, %p125
      %p127 = scmp.ne.s32.totalorder %s118, %s119
      %p128 = scmp.eq.s32.totalorder %s24, 0
      %p129 = por %p127, %p128
      %p130 = scmp.ne.s32.totalorder %s118, %s119
      %p131 = scmp.eq.s32.totalorder %s25, 1
      %p132 = por %p130, %p131
      %p134 = scmp.ne.s32.totalorder %s119, %s133
      %p135 = scmp.eq.s32.totalorder %s25, 0
      %p136 = por %p134, %p135
      %s137 = ssub.s32 %s19, %s26
      %p138 = scmp.eq.s32.totalorder %s137, 0
      %s140 = sadd.s32 %s139, 1
      %s141 = scalar_select %p138, %s139, %s140
      %p144 = pneg %p138
      %p145 = scmp.eq.s32.totalorder %s19, 1
      %p146 = por %p144, %p145
      %p147 = scmp.ne.s32.totalorder %s139, %s142
      %p148 = scmp.eq.s32.totalorder %s19, 0
      %p149 = por %p147, %p148
      %p150 = scmp.ne.s32.totalorder %s139, %s142
      %p151 = scmp.eq.s32.totalorder %s24, 1
      %p152 = por %p150, %p151
      %p153 = scmp.ne.s32.totalorder %s142, %s143
      %p154 = scmp.eq.s32.totalorder %s24, 0
      %p155 = por %p153, %p154
      %p156 = scmp.ne.s32.totalorder %s142, %s143
      %p157 = scmp.eq.s32.totalorder %s25, 1
      %p158 = por %p156, %p157
      %p160 = scmp.ne.s32.totalorder %s143, %s159
      %p161 = scmp.eq.s32.totalorder %s25, 0
      %p162 = por %p160, %p161
      %p163 = scmp.le.s32.totalorder 1, %s19
      %p164 = scmp.lt.s32.totalorder %s19, 3
      %p165 = pnand %p163, %p164
      %p166 = pneg %p165
      // Predicated region
      $region9: #{tpu_custom_call.1} parent=5 // pred_check
        _
      $region10: #{tpu_custom_call.1} parent=5 // pred_check_branch
        %168 = sbr.rel (%p165) target = $region12
      $region11: #{tpu_custom_call.1} parent=5 // pred_region
        %s169 = ssub.s32 %s19, 1
        // Predicated region
        $region13: #{tpu_custom_call.1} parent=11 // pred_check
          %p170 = pneg %p66
        $region14: #{tpu_custom_call.1} parent=11 // pred_check_branch
          %172 = sbr.rel (%p170) target = $region16
        $region15: #{tpu_custom_call.1} parent=11 // pred_region
          %s174 = ssub.s32 64, 64
          %175 = vsyncadd [#allocation9], %s174
          %s177 = sshll.u32 [#allocation8], 4
          %s178 = int_to_ptr.vmem [resolvable:$true] %s177
          %180 = dma.hbm_to_vmem [thread:$0]  %s1, 64, %s178, [#allocation9]
        $region16: #{tpu_custom_call.1} parent=11 // pred_fallthru
          _
        // Predicated region
        $region17: #{tpu_custom_call.1} parent=11 // pred_check
          %p181 = pneg %p87
        $region18: #{tpu_custom_call.1} parent=11 // pred_check_branch
          %183 = sbr.rel (%p181) target = $region20
        $region19: #{tpu_custom_call.1} parent=11 // pred_region
          _
        $region20: #{tpu_custom_call.1} parent=11 // pred_fallthru
          _
        // Predicated region
        $region21: #{tpu_custom_call.1} parent=11 // pred_check
          %p184 = pneg %p108
        $region22: #{tpu_custom_call.1} parent=11 // pred_check_branch
          %186 = sbr.rel (%p184) target = $region24
        $region23: #{tpu_custom_call.1} parent=11 // pred_region
          _
        $region24: #{tpu_custom_call.1} parent=11 // pred_fallthru
          _
        // Predicated region
        $region25: #{tpu_custom_call.1} parent=11 // pred_check
          %p187 = pneg %p129
        $region26: #{tpu_custom_call.1} parent=11 // pred_check_branch
          %189 = sbr.rel (%p187) target = $region28
        $region27: #{tpu_custom_call.1} parent=11 // pred_region
          %s191 = ssub.s32 16, 16
          %192 = vsyncadd [#allocation7], %s191
          %s194 = sshll.u32 %s4, 4
          %s195 = int_to_ptr.vmem [resolvable:$true] %s194
          %197 = dma.vmem_to_smem %s195, 16, [#allocation10], [#allocation7]
        $region28: #{tpu_custom_call.1} parent=11 // pred_fallthru
          _
      $region12: #{tpu_custom_call.1} parent=5 // pred_fallthru
        _
      %p198 = scmp.lt.s32.totalorder %s19, 2
      // Predicated region
      $region29: #{tpu_custom_call.1} parent=5 // pred_check
        %p199 = pneg %p198
      $region30: #{tpu_custom_call.1} parent=5 // pred_check_branch
        %201 = sbr.rel (%p199) target = $region32
      $region31: #{tpu_custom_call.1} parent=5 // pred_region
        // Predicated region
        $region33: #{tpu_custom_call.1} parent=31 // pred_check
          %p202 = pneg %p39
        $region34: #{tpu_custom_call.1} parent=31 // pred_check_branch
          %204 = sbr.rel (%p202) target = $region36
        $region35: #{tpu_custom_call.1} parent=31 // pred_region
          %s205 = sand.u32 %s29, 1
          %s206 = scalar_lea.sflag [#allocation5], %s205
          %s207 = sand.u32 %s29, 1
          %s208 = smul.addr %s207, 8
          %s209 = scalar_lea.vmem [#allocation4], %s208
          %s211 = ssub.s32 128, 128
          %212 = vsyncadd %s206, %s211
          %s213 = smul.addr %s19, 2
          %s214 = smul.addr %s213, 64
          %s215 = scalar_lea.hbm %s0, %s214
          %s217 = sshll.u32 %s209, 4
          %s218 = int_to_ptr.vmem [resolvable:$true] %s217
          %220 = dma.hbm_to_vmem [thread:$0]  %s215, 128, %s218, %s206
        $region36: #{tpu_custom_call.1} parent=31 // pred_fallthru
          _
      $region32: #{tpu_custom_call.1} parent=5 // pred_fallthru
        _
      %p221 = scmp.le.s32.totalorder 1, %s19
      %p222 = scmp.lt.s32.totalorder %s19, 3
      %p223 = pnand %p221, %p222
      %p224 = pneg %p223
      // Predicated region
      $region37: #{tpu_custom_call.1} parent=5 // pred_check
        _
      $region38: #{tpu_custom_call.1} parent=5 // pred_check_branch
        %226 = sbr.rel (%p223) target = $region40
      $region39: #{tpu_custom_call.1} parent=5 // pred_region
        %s227 = ssub.s32 %s19, 1
        %s228 = sand.u32 %s32, 1
        %s229 = scalar_lea.sflag [#allocation5], %s228
        %s230 = sand.u32 %s32, 1
        %s231 = smul.addr %s230, 8
        %s232 = scalar_lea.vmem [#allocation4], %s231
        // Predicated region
        $region41: #{tpu_custom_call.1} parent=39 // pred_check
          %p233 = pneg %p45
        $region42: #{tpu_custom_call.1} parent=39 // pred_check_branch
          %235 = sbr.rel (%p233) target = $region44
        $region43: #{tpu_custom_call.1} parent=39 // pred_region
          %236 = dma.done %s229, 128
        $region44: #{tpu_custom_call.1} parent=39 // pred_fallthru
          _
        // Predicated region
        $region45: #{tpu_custom_call.1} parent=39 // pred_check
          %p237 = pneg %p66
        $region46: #{tpu_custom_call.1} parent=39 // pred_check_branch
          %239 = sbr.rel (%p237) target = $region48
        $region47: #{tpu_custom_call.1} parent=39 // pred_region
          %240 = dma.done [#allocation9], 64
        $region48: #{tpu_custom_call.1} parent=39 // pred_fallthru
          _
        // Predicated region
        $region49: #{tpu_custom_call.1} parent=39 // pred_check
          %p241 = pneg %p129
        $region50: #{tpu_custom_call.1} parent=39 // pred_check_branch
          %243 = sbr.rel (%p241) target = $region52
        $region51: #{tpu_custom_call.1} parent=39 // pred_region
          %244 = dma.done [#allocation7], 16
        $region52: #{tpu_custom_call.1} parent=39 // pred_fallthru
          _
        %245 = sfence
        %s246 = sand.u32 %s32, 1
        %s247 = scalar_lea.sflag [#allocation5], %s246
        %s248 = sand.u32 %s32, 1
        %s249 = smul.addr %s248, 8
        %s250 = scalar_lea.vmem [#allocation4], %s249
        %p251 = pneg %p45
        %p252 = pneg %p42
        %p253 = pneg %p66
        %p254 = pneg %p63
        %p255 = pneg %p87
        %p256 = pneg %p84
        %p257 = pneg %p108
        %p258 = pneg %p105
        %p259 = pneg %p129
        %p260 = pneg %p126
        %p261 = pneg %p155
        %p262 = pneg %p152
        %s263 = sand.u32 %s142, 1
        %s264 = scalar_lea.sflag [#allocation6], %s263
        %s265 = sand.u32 %s142, 1
        %s266 = smul.addr %s265, 8
        %s267 = scalar_lea.vmem [#allocation11], %s266
        %s268 = smul.u32 0, 2
        %s269 = smul.addr %s268, 4
        %s270 = scalar_lea.vmem %s232, %s269 [#allocation4]
        %v271 = vld [vmem:[%s270] sm:$0xff]
        %v273 = vcombine.high %v271, %v271
        %vm275 = vcmask 1043456
        %v276 = vsel %vm275, %v271, 0.0
        %v277 = vsel %vm275, %v273, 0.0
        %v278 = vadd.f32 %v276, %v277
        %279 = vadd.xlane.f32.xlu0 %v278
        %v280 = vpop.xlane.xlu0 %279
        %v281 = vmul.f32 %v280, 0.00390625
        %vm282 = vcmask 3072
        %283 = vst.msk [vmem:[#allocation3] sm:$0xf] %vm282, %v281
        %v284 = vld [vmem:[#allocation3] sm:$0xf]
        %v285 = vld [vmem:[#allocation8] sm:$0xf]
        %v286 = vld [vmem:[%s2] sm:$0xf]
        %vm287 = vcmask 31744
        %v289 = vsel %vm287, %v285, 0
        %v292 = vsel %vm275, %v284, 0
        %294 = vmatprep.subr.mxu0 0.0
        %295 = vmatpush1.msra.mxu0 %v292
        %296 = vmatprep.subr.mxu0 0.0
        %297 = vmatpush1.msra.mxu0 0.0
        %298 = vmatprep.subr.mxu0 0.0
        %299 = vmatpush1.msra.mxu0 0.0
        %300 = vmatprep.subr.mxu0 0.0
        %301 = vmatpush1.msra.mxu0 0.0
        %302 = vmatprep.subr.mxu0 0.0
        %303 = vmatpush1.msra.mxu0 0.0
        %304 = vmatprep.subr.mxu0 0.0
        %305 = vmatpush1.msra.mxu0 0.0
        %306 = vmatprep.subr.mxu0 0.0
        %307 = vmatpush1.msra.mxu0 0.0
        %308 = vmatprep.subr.mxu0 0.0
        %309 = vmatpush1.msra.mxu0 0.0
        %310 = vmatprep.subr.mxu0 0.0
        %311 = vmatpush1.msra.mxu0 0.0
        %312 = vmatprep.subr.mxu0 0.0
        %313 = vmatpush1.msra.mxu0 0.0
        %314 = vmatprep.subr.mxu0 0.0
        %315 = vmatpush1.msra.mxu0 0.0
        %316 = vmatprep.subr.mxu0 0.0
        %317 = vmatpush1.msra.mxu0 0.0
        %318 = vmatprep.subr.mxu0 0.0
        %319 = vmatpush1.msra.mxu0 0.0
        %320 = vmatprep.subr.mxu0 0.0
        %321 = vmatpush1.msra.mxu0 0.0
        %322 = vmatprep.subr.mxu0 0.0
        %323 = vmatpush1.msra.mxu0 0.0
        %324 = vmatprep.subr.mxu0 0.0
        %325 = vmatpush1.msra.mxu0 0.0
        %326 = vmatprep.subr.mxu0 0.0
        %327 = vmatpush1.msra.mxu0 0.0
        %328 = vmatprep.subr.mxu0 0.0
        %329 = vmatpush1.msra.mxu0 0.0
        %330 = vmatprep.subr.mxu0 0.0
        %331 = vmatpush1.msra.mxu0 0.0
        %332 = vmatprep.subr.mxu0 0.0
        %333 = vmatpush1.msra.mxu0 0.0
        %334 = vmatprep.subr.mxu0 0.0
        %335 = vmatpush1.msra.mxu0 0.0
        %336 = vmatprep.subr.mxu0 0.0
        %337 = vmatpush1.msra.mxu0 0.0
        %338 = vmatprep.subr.mxu0 0.0
        %339 = vmatpush1.msra.mxu0 0.0
        %340 = vmatprep.subr.mxu0 0.0
        %341 = vmatpush1.msra.mxu0 0.0
        %342 = vmatprep.subr.mxu0 0.0
        %343 = vmatpush1.msra.mxu0 0.0
        %344 = vmatprep.subr.mxu0 0.0
        %345 = vmatpush1.msra.mxu0 0.0
        %346 = vmatprep.subr.mxu0 0.0
        %347 = vmatpush1.msra.mxu0 0.0
        %348 = vmatprep.subr.mxu0 0.0
        %349 = vmatpush1.msra.mxu0 0.0
        %350 = vmatprep.subr.mxu0 0.0
        %351 = vmatpush1.msra.mxu0 0.0
        %352 = vmatprep.subr.mxu0 0.0
        %353 = vmatpush1.msra.mxu0 0.0
        %354 = vmatprep.subr.mxu0 0.0
        %355 = vmatpush1.msra.mxu0 0.0
        %356 = vmatprep.subr.mxu0 0.0
        %357 = vmatpush1.msra.mxu0 0.0
        %358 = vmatprep.mubr.f32.mxu0 0.0
        %359 = vmatmul.mubr.f32.gmra.mrb[0].mxu0 %v289
        %v360 = vpop.f32.mrb[0].mxu0
        %v361 = vadd.f32 %v286, %v360
        %v362 = vpop.f32.mrb[0].mxu0
        %363 = vdwg.mxu0
        %v364 = vxor.u32 %v361, 2147483648
        %v365 = vmul.f32 %v364, 1.442695
        %v366 = vpow.pop %v365
        %v367 = vadd.f32 %v366, 1.0
        %v368 = vrcp.pop %v367
        %v369 = vmul.f32 1.0, %v368
        %370 = vst.msk [vmem:[#allocation3] sm:$0xf] %vm282, %v369
        %v371 = vld [vmem:[%s270] sm:$0xff]
        %v372 = vld [vmem:[#allocation3] sm:$0xf]
        %374 = vset.pattern.permute.xlu0 0
        %375 = vperm.xlu0 %374, %v372
        %v376 = vpop.permute.xlu0 %375
        %v378 = vunpack.c.l.s4 839922192
        %v379 = vunpack.c.0.s8 %v378
        %v380 = vlaneseq
        %v381 = vshrl.u32 %v380, 7
        %v382 = vsub.s32 %v379, %v381
        %v383 = vrot.slane %v376, %v382
        %v385 = vmul.f32 %v371, %v383
        %v387 = vcombine.high %v385, %v385
        %v389 = vsel %vm275, %v385, 0.0
        %v390 = vrot.slane %v389, 4
        %v391 = vadd.f32 %v389, %v390
        %v392 = vrot.slane %v391, 2
        %v393 = vadd.f32 %v391, %v392
        %v394 = vrot.slane %v393, 1
        %v395 = vadd.f32 %v393, %v394
        %v396 = vsel %vm275, %v387, 0.0
        %v397 = vrot.slane %v396, 4
        %v398 = vadd.f32 %v396, %v397
        %v399 = vrot.slane %v398, 2
        %v400 = vadd.f32 %v398, %v399
        %v401 = vrot.slane %v400, 1
        %v402 = vadd.f32 %v400, %v401
        %v403 = vadd.f32 %v395, 0.0
        %v404 = vadd.f32 %v402, 0.0
        %v405 = vsel %vm275, %v385, -inf
        %v406 = vrot.slane %v405, 4
        %v407 = vmax.f32 %v405, %v406
        %v408 = vrot.slane %v407, 2
        %v409 = vmax.f32 %v407, %v408
        %v410 = vrot.slane %v409, 1
        %v411 = vmax.f32 %v409, %v410
        %v412 = vsel %vm275, %v387, -inf
        %v413 = vrot.slane %v412, 4
        %v414 = vmax.f32 %v412, %v413
        %v415 = vrot.slane %v414, 2
        %v416 = vmax.f32 %v414, %v415
        %v417 = vrot.slane %v416, 1
        %v418 = vmax.f32 %v416, %v417
        %v419 = vmul.f32 %v403, 0.25
        %v420 = vmul.f32 %v404, 0.25
        %421 = vst [vmem:[#allocation2] sm:$0x3] 0.0
        %422 = vst [vmem:[#allocation2 + $0x6] sm:$0x3] 0.0
        %v425 = vcombine.low %v419, %v420
        %v427 = vunpack.c.l.s4 1966171168
        %v428 = vunpack.c.0.s8 %v427
        %v429 = vlaneseq
        %v430 = vshrl.u32 %v429, 7
        %v431 = vsub.s32 %v428, %v430
        %v432 = vrot.slane %v425, %v431
        %v434 = vunpack.c.l.s4 1966171168
        %v435 = vunpack.c.0.s8 %v434
        %v436 = vlaneseq
        %v437 = vshrl.u32 %v436, 7
        %v438 = vsub.s32 %v435, %v437
        %v439 = vrot.slane %v432, %v438
        %v441 = vlaneseq
        %vm442 = vcmp.ge.s32.totalorder %v441, 0
        %vm443 = vcmp.lt.s32.totalorder %v441, 256
        %vm444 = vmand %vm442, %vm443
        %s445 = scalar_lea.vmem [#allocation2], 2
        %446 = vst.msk [vmem:[%s445] ss:$2 sm:$0x3] %vm444, %v439
        %v449 = vcombine.low %v411, %v418
        %v451 = vunpack.c.l.s4 1966171168
        %v452 = vunpack.c.0.s8 %v451
        %v453 = vlaneseq
        %v454 = vshrl.u32 %v453, 7
        %v455 = vsub.s32 %v452, %v454
        %v456 = vrot.slane %v449, %v455
        %v458 = vunpack.c.l.s4 1966171168
        %v459 = vunpack.c.0.s8 %v458
        %v460 = vlaneseq
        %v461 = vshrl.u32 %v460, 7
        %v462 = vsub.s32 %v459, %v461
        %v463 = vrot.slane %v456, %v462
        %s465 = scalar_lea.vmem [#allocation2], 3
        %466 = vst.msk [vmem:[%s465] ss:$2 sm:$0x3] %vm444, %v463
        %s467 = sld [smem:[#allocation10]]
        %v468 = vld [vmem:[#allocation2] ss:$2 sm:$0x7]
        %v469 = vstv %s467
        %v470 = vmul.f32 %v469, %v468
        %v471 = vadd.f32 %v470, 0.0
        %s472 = sld [smem:[#allocation10 + $0x7]]
        %v473 = vstv %s472
        %v474 = vmul.f32 %v473, %v468
        %476 = vrot.lane.b32.xlu0 %v474, 112
        %v477 = vpop.permute.xlu0 %476
        %v478 = vrot.slane %v477, 1
        %vm479 = vcmask 916480
        %v480 = vsel %vm479, %v477, %v478
        %v482 = vadd.f32 %v471, %v480
        %s483 = sld [smem:[#allocation10 + $0xe]]
        %v484 = vstv %s483
        %v485 = vmul.f32 %v484, %v468
        %487 = vrot.lane.b32.xlu0 %v485, 96
        %v488 = vpop.permute.xlu0 %487
        %v489 = vrot.slane %v488, 1
        %vm490 = vcmask 785408
        %v491 = vsel %vm490, %v488, %v489
        %v493 = vadd.f32 %v482, %v491
        %s494 = sld [smem:[#allocation10 + $0x15]]
        %v495 = vstv %s494
        %v496 = vmul.f32 %v495, %v468
        %498 = vrot.lane.b32.xlu0 %v496, 80
        %v499 = vpop.permute.xlu0 %498
        %v500 = vrot.slane %v499, 1
        %vm501 = vcmask 654336
        %v502 = vsel %vm501, %v499, %v500
        %v504 = vadd.f32 %v493, %v502
        %s505 = sld [smem:[#allocation10 + $0x1c]]
        %s506 = scalar_lea.vmem [#allocation2], 2
        %v507 = vld [vmem:[%s506] ss:$2 sm:$0x7]
        %v508 = vstv %s505
        %v509 = vmul.f32 %v508, %v507
        %511 = vrot.lane.b32.xlu0 %v509, 64
        %v512 = vpop.permute.xlu0 %511
        %v513 = vrot.slane %v512, 7
        %vm514 = vcmask 523264
        %v515 = vsel %vm514, %v513, %v512
        %v517 = vadd.f32 %v504, %v515
        %s518 = sld [smem:[#allocation10 + $0x23]]
        %v519 = vstv %s518
        %v520 = vmul.f32 %v519, %v507
        %522 = vrot.lane.b32.xlu0 %v520, 48
        %v523 = vpop.permute.xlu0 %522
        %v524 = vrot.slane %v523, 7
        %vm525 = vcmask 392192
        %v526 = vsel %vm525, %v524, %v523
        %v528 = vadd.f32 %v517, %v526
        %s529 = sld [smem:[#allocation10 + $0x2a]]
        %v530 = vstv %s529
        %v531 = vmul.f32 %v530, %v507
        %533 = vrot.lane.b32.xlu0 %v531, 32
        %v534 = vpop.permute.xlu0 %533
        %v535 = vrot.slane %v534, 7
        %vm536 = vcmask 261120
        %v537 = vsel %vm536, %v535, %v534
        %v539 = vadd.f32 %v528, %v537
        %s540 = sld [smem:[#allocation10 + $0x31]]
        %s541 = scalar_lea.vmem [#allocation2], 1
        %v542 = vld [vmem:[%s541] ss:$2 sm:$0x7]
        %v543 = vstv %s540
        %v544 = vmul.f32 %v543, %v542
        %v545 = vadd.f32 %v539, %v544
        %s546 = sld [smem:[#allocation10 + $0x38]]
        %v547 = vstv %s546
        %v548 = vmul.f32 %v547, %v542
        %550 = vrot.lane.b32.xlu0 %v548, 112
        %v551 = vpop.permute.xlu0 %550
        %v552 = vrot.slane %v551, 1
        %v553 = vsel %vm479, %v551, %v552
        %v555 = vadd.f32 %v545, %v553
        %s556 = sld [smem:[#allocation10 + $0x3f]]
        %v557 = vstv %s556
        %v558 = vmul.f32 %v557, %v542
        %560 = vrot.lane.b32.xlu0 %v558, 96
        %v561 = vpop.permute.xlu0 %560
        %v562 = vrot.slane %v561, 1
        %v563 = vsel %vm490, %v561, %v562
        %v565 = vadd.f32 %v555, %v563
        %s566 = sld [smem:[#allocation10 + $0x46]]
        %v567 = vstv %s566
        %v568 = vmul.f32 %v567, %v542
        %570 = vrot.lane.b32.xlu0 %v568, 80
        %v571 = vpop.permute.xlu0 %570
        %v572 = vrot.slane %v571, 1
        %v573 = vsel %vm501, %v571, %v572
        %v575 = vadd.f32 %v565, %v573
        %s576 = sld [smem:[#allocation10 + $0x4d]]
        %s577 = scalar_lea.vmem [#allocation2], 3
        %v578 = vld [vmem:[%s577] ss:$2 sm:$0x7]
        %v579 = vstv %s576
        %v580 = vmul.f32 %v579, %v578
        %582 = vrot.lane.b32.xlu0 %v580, 64
        %v583 = vpop.permute.xlu0 %582
        %v584 = vrot.slane %v583, 7
        %v585 = vsel %vm514, %v584, %v583
        %v587 = vadd.f32 %v575, %v585
        %s588 = sld [smem:[#allocation10 + $0x54]]
        %v589 = vstv %s588
        %v590 = vmul.f32 %v589, %v578
        %592 = vrot.lane.b32.xlu0 %v590, 48
        %v593 = vpop.permute.xlu0 %592
        %v594 = vrot.slane %v593, 7
        %v595 = vsel %vm525, %v594, %v593
        %v597 = vadd.f32 %v587, %v595
        %s598 = sld [smem:[#allocation10 + $0x5b]]
        %v599 = vstv %s598
        %v600 = vmul.f32 %v599, %v578
        %602 = vrot.lane.b32.xlu0 %v600, 32
        %v603 = vpop.permute.xlu0 %602
        %v604 = vrot.slane %v603, 7
        %v605 = vsel %vm536, %v604, %v603
        %v607 = vadd.f32 %v597, %v605
        %v608 = vld [vmem:[%s3] ss:$8 sm:$0x3]
        %610 = vrot.lane.b32.xlu0 %v607, 51
        %v611 = vpop.permute.xlu0 %610
        %v612 = vrot.slane %v611, 1
        %vm613 = vcmask 416768
        %v614 = vsel %vm613, %v611, %v612
        %v616 = vmul.f32 %v608, %v614
        %v617 = vadd.f32 %v616, 0.0
        %s618 = sld [smem:[#allocation10 + $0x1]]
        %v619 = vstv %s618
        %v620 = vmul.f32 %v619, %v468
        %v621 = vadd.f32 %v620, 0.0
        %s622 = sld [smem:[#allocation10 + $0x8]]
        %v623 = vstv %s622
        %v624 = vmul.f32 %v623, %v468
        %626 = vrot.lane.b32.xlu0 %v624, 112
        %v627 = vpop.permute.xlu0 %626
        %v628 = vrot.slane %v627, 1
        %v629 = vsel %vm479, %v627, %v628
        %v631 = vadd.f32 %v621, %v629
        %s632 = sld [smem:[#allocation10 + $0xf]]
        %v633 = vstv %s632
        %v634 = vmul.f32 %v633, %v468
        %636 = vrot.lane.b32.xlu0 %v634, 96
        %v637 = vpop.permute.xlu0 %636
        %v638 = vrot.slane %v637, 1
        %v639 = vsel %vm490, %v637, %v638
        %v641 = vadd.f32 %v631, %v639
        %s642 = sld [smem:[#allocation10 + $0x16]]
        %v643 = vstv %s642
        %v644 = vmul.f32 %v643, %v468
        %646 = vrot.lane.b32.xlu0 %v644, 80
        %v647 = vpop.permute.xlu0 %646
        %v648 = vrot.slane %v647, 1
        %v649 = vsel %vm501, %v647, %v648
        %v651 = vadd.f32 %v641, %v649
        %s652 = sld [smem:[#allocation10 + $0x1d]]
        %v653 = vstv %s652
        %v654 = vmul.f32 %v653, %v507
        %656 = vrot.lane.b32.xlu0 %v654, 64
        %v657 = vpop.permute.xlu0 %656
        %v658 = vrot.slane %v657, 7
        %v659 = vsel %vm514, %v658, %v657
        %v661 = vadd.f32 %v651, %v659
        %s662 = sld [smem:[#allocation10 + $0x24]]
        %v663 = vstv %s662
        %v664 = vmul.f32 %v663, %v507
        %666 = vrot.lane.b32.xlu0 %v664, 48
        %v667 = vpop.permute.xlu0 %666
        %v668 = vrot.slane %v667, 7
        %v669 = vsel %vm525, %v668, %v667
        %v671 = vadd.f32 %v661, %v669
        %s672 = sld [smem:[#allocation10 + $0x2b]]
        %v673 = vstv %s672
        %v674 = vmul.f32 %v673, %v507
        %676 = vrot.lane.b32.xlu0 %v674, 32
        %v677 = vpop.permute.xlu0 %676
        %v678 = vrot.slane %v677, 7
        %v679 = vsel %vm536, %v678, %v677
        %v681 = vadd.f32 %v671, %v679
        %s682 = sld [smem:[#allocation10 + $0x32]]
        %v683 = vstv %s682
        %v684 = vmul.f32 %v683, %v542
        %v685 = vadd.f32 %v681, %v684
        %s686 = sld [smem:[#allocation10 + $0x39]]
        %v687 = vstv %s686
        %v688 = vmul.f32 %v687, %v542
        %690 = vrot.lane.b32.xlu0 %v688, 112
        %v691 = vpop.permute.xlu0 %690
        %v692 = vrot.slane %v691, 1
        %v693 = vsel %vm479, %v691, %v692
        %v695 = vadd.f32 %v685, %v693
        %s696 = sld [smem:[#allocation10 + $0x40]]
        %v697 = vstv %s696
        %v698 = vmul.f32 %v697, %v542
        %700 = vrot.lane.b32.xlu0 %v698, 96
        %v701 = vpop.permute.xlu0 %700
        %v702 = vrot.slane %v701, 1
        %v703 = vsel %vm490, %v701, %v702
        %v705 = vadd.f32 %v695, %v703
        %s706 = sld [smem:[#allocation10 + $0x47]]
        %v707 = vstv %s706
        %v708 = vmul.f32 %v707, %v542
        %710 = vrot.lane.b32.xlu0 %v708, 80
        %v711 = vpop.permute.xlu0 %710
        %v712 = vrot.slane %v711, 1
        %v713 = vsel %vm501, %v711, %v712
        %v715 = vadd.f32 %v705, %v713
        %s716 = sld [smem:[#allocation10 + $0x4e]]
        %v717 = vstv %s716
        %v718 = vmul.f32 %v717, %v578
        %720 = vrot.lane.b32.xlu0 %v718, 64
        %v721 = vpop.permute.xlu0 %720
        %v722 = vrot.slane %v721, 7
        %v723 = vsel %vm514, %v722, %v721
        %v725 = vadd.f32 %v715, %v723
        %s726 = sld [smem:[#allocation10 + $0x55]]
        %v727 = vstv %s726
        %v728 = vmul.f32 %v727, %v578
        %730 = vrot.lane.b32.xlu0 %v728, 48
        %v731 = vpop.permute.xlu0 %730
        %v732 = vrot.slane %v731, 7
        %v733 = vsel %vm525, %v732, %v731
        %v735 = vadd.f32 %v725, %v733
        %s736 = sld [smem:[#allocation10 + $0x5c]]
        %v737 = vstv %s736
        %v738 = vmul.f32 %v737, %v578
        %740 = vrot.lane.b32.xlu0 %v738, 32
        %v741 = vpop.permute.xlu0 %740
        %v742 = vrot.slane %v741, 7
        %v743 = vsel %vm536, %v742, %v741
        %v745 = vadd.f32 %v735, %v743
        %s746 = scalar_lea.vmem %s3, 1
        %v747 = vld [vmem:[%s746] ss:$8 sm:$0x3]
        %749 = vrot.lane.b32.xlu0 %v745, 50
        %v750 = vpop.permute.xlu0 %749
        %v751 = vrot.slane %v750, 1
        %vm752 = vcmask 408576
        %v753 = vsel %vm752, %v750, %v751
        %v755 = vmul.f32 %v747, %v753
        %v756 = vadd.f32 %v617, %v755
        %s757 = sld [smem:[#allocation10 + $0x2]]
        %v758 = vstv %s757
        %v759 = vmul.f32 %v758, %v468
        %v760 = vadd.f32 %v759, 0.0
        %s761 = sld [smem:[#allocation10 + $0x9]]
        %v762 = vstv %s761
        %v763 = vmul.f32 %v762, %v468
        %765 = vrot.lane.b32.xlu0 %v763, 112
        %v766 = vpop.permute.xlu0 %765
        %v767 = vrot.slane %v766, 1
        %v768 = vsel %vm479, %v766, %v767
        %v770 = vadd.f32 %v760, %v768
        %s771 = sld [smem:[#allocation10 + $0x10]]
        %v772 = vstv %s771
        %v773 = vmul.f32 %v772, %v468
        %775 = vrot.lane.b32.xlu0 %v773, 96
        %v776 = vpop.permute.xlu0 %775
        %v777 = vrot.slane %v776, 1
        %v778 = vsel %vm490, %v776, %v777
        %v780 = vadd.f32 %v770, %v778
        %s781 = sld [smem:[#allocation10 + $0x17]]
        %v782 = vstv %s781
        %v783 = vmul.f32 %v782, %v468
        %785 = vrot.lane.b32.xlu0 %v783, 80
        %v786 = vpop.permute.xlu0 %785
        %v787 = vrot.slane %v786, 1
        %v788 = vsel %vm501, %v786, %v787
        %v790 = vadd.f32 %v780, %v788
        %s791 = sld [smem:[#allocation10 + $0x1e]]
        %v792 = vstv %s791
        %v793 = vmul.f32 %v792, %v507
        %795 = vrot.lane.b32.xlu0 %v793, 64
        %v796 = vpop.permute.xlu0 %795
        %v797 = vrot.slane %v796, 7
        %v798 = vsel %vm514, %v797, %v796
        %v800 = vadd.f32 %v790, %v798
        %s801 = sld [smem:[#allocation10 + $0x25]]
        %v802 = vstv %s801
        %v803 = vmul.f32 %v802, %v507
        %805 = vrot.lane.b32.xlu0 %v803, 48
        %v806 = vpop.permute.xlu0 %805
        %v807 = vrot.slane %v806, 7
        %v808 = vsel %vm525, %v807, %v806
        %v810 = vadd.f32 %v800, %v808
        %s811 = sld [smem:[#allocation10 + $0x2c]]
        %v812 = vstv %s811
        %v813 = vmul.f32 %v812, %v507
        %815 = vrot.lane.b32.xlu0 %v813, 32
        %v816 = vpop.permute.xlu0 %815
        %v817 = vrot.slane %v816, 7
        %v818 = vsel %vm536, %v817, %v816
        %v820 = vadd.f32 %v810, %v818
        %s821 = sld [smem:[#allocation10 + $0x33]]
        %v822 = vstv %s821
        %v823 = vmul.f32 %v822, %v542
        %v824 = vadd.f32 %v820, %v823
        %s825 = sld [smem:[#allocation10 + $0x3a]]
        %v826 = vstv %s825
        %v827 = vmul.f32 %v826, %v542
        %829 = vrot.lane.b32.xlu0 %v827, 112
        %v830 = vpop.permute.xlu0 %829
        %v831 = vrot.slane %v830, 1
        %v832 = vsel %vm479, %v830, %v831
        %v834 = vadd.f32 %v824, %v832
        %s835 = sld [smem:[#allocation10 + $0x41]]
        %v836 = vstv %s835
        %v837 = vmul.f32 %v836, %v542
        %839 = vrot.lane.b32.xlu0 %v837, 96
        %v840 = vpop.permute.xlu0 %839
        %v841 = vrot.slane %v840, 1
        %v842 = vsel %vm490, %v840, %v841
        %v844 = vadd.f32 %v834, %v842
        %s845 = sld [smem:[#allocation10 + $0x48]]
        %v846 = vstv %s845
        %v847 = vmul.f32 %v846, %v542
        %849 = vrot.lane.b32.xlu0 %v847, 80
        %v850 = vpop.permute.xlu0 %849
        %v851 = vrot.slane %v850, 1
        %v852 = vsel %vm501, %v850, %v851
        %v854 = vadd.f32 %v844, %v852
        %s855 = sld [smem:[#allocation10 + $0x4f]]
        %v856 = vstv %s855
        %v857 = vmul.f32 %v856, %v578
        %859 = vrot.lane.b32.xlu0 %v857, 64
        %v860 = vpop.permute.xlu0 %859
        %v861 = vrot.slane %v860, 7
        %v862 = vsel %vm514, %v861, %v860
        %v864 = vadd.f32 %v854, %v862
        %s865 = sld [smem:[#allocation10 + $0x56]]
        %v866 = vstv %s865
        %v867 = vmul.f32 %v866, %v578
        %869 = vrot.lane.b32.xlu0 %v867, 48
        %v870 = vpop.permute.xlu0 %869
        %v871 = vrot.slane %v870, 7
        %v872 = vsel %vm525, %v871, %v870
        %v874 = vadd.f32 %v864, %v872
        %s875 = sld [smem:[#allocation10 + $0x5d]]
        %v876 = vstv %s875
        %v877 = vmul.f32 %v876, %v578
        %879 = vrot.lane.b32.xlu0 %v877, 32
        %v880 = vpop.permute.xlu0 %879
        %v881 = vrot.slane %v880, 7
        %v882 = vsel %vm536, %v881, %v880
        %v884 = vadd.f32 %v874, %v882
        %s885 = scalar_lea.vmem %s3, 2
        %v886 = vld [vmem:[%s885] ss:$8 sm:$0x3]
        %888 = vrot.lane.b32.xlu0 %v884, 49
        %v889 = vpop.permute.xlu0 %888
        %v890 = vrot.slane %v889, 1
        %vm891 = vcmask 400384
        %v892 = vsel %vm891, %v889, %v890
        %v894 = vmul.f32 %v886, %v892
        %v895 = vadd.f32 %v756, %v894
        %s896 = sld [smem:[#allocation10 + $0x3]]
        %v897 = vstv %s896
        %v898 = vmul.f32 %v897, %v468
        %v899 = vadd.f32 %v898, 0.0
        %s900 = sld [smem:[#allocation10 + $0xa]]
        %v901 = vstv %s900
        %v902 = vmul.f32 %v901, %v468
        %904 = vrot.lane.b32.xlu0 %v902, 112
        %v905 = vpop.permute.xlu0 %904
        %v906 = vrot.slane %v905, 1
        %v907 = vsel %vm479, %v905, %v906
        %v909 = vadd.f32 %v899, %v907
        %s910 = sld [smem:[#allocation10 + $0x11]]
        %v911 = vstv %s910
        %v912 = vmul.f32 %v911, %v468
        %914 = vrot.lane.b32.xlu0 %v912, 96
        %v915 = vpop.permute.xlu0 %914
        %v916 = vrot.slane %v915, 1
        %v917 = vsel %vm490, %v915, %v916
        %v919 = vadd.f32 %v909, %v917
        %s920 = sld [smem:[#allocation10 + $0x18]]
        %v921 = vld [vmem:[%s445] ss:$2 sm:$0x3]
        %v922 = vstv %s920
        %v923 = vmul.f32 %v922, %v921
        %925 = vrot.lane.b32.xlu0 %v923, 80
        %v926 = vpop.permute.xlu0 %925
        %v927 = vrot.slane %v926, 7
        %v928 = vsel %vm501, %v927, %v926
        %v930 = vadd.f32 %v919, %v928
        %s931 = sld [smem:[#allocation10 + $0x1f]]
        %v932 = vstv %s931
        %v933 = vmul.f32 %v932, %v507
        %935 = vrot.lane.b32.xlu0 %v933, 64
        %v936 = vpop.permute.xlu0 %935
        %v937 = vrot.slane %v936, 7
        %v938 = vsel %vm514, %v937, %v936
        %v940 = vadd.f32 %v930, %v938
        %s941 = sld [smem:[#allocation10 + $0x26]]
        %v942 = vstv %s941
        %v943 = vmul.f32 %v942, %v507
        %945 = vrot.lane.b32.xlu0 %v943, 48
        %v946 = vpop.permute.xlu0 %945
        %v947 = vrot.slane %v946, 7
        %v948 = vsel %vm525, %v947, %v946
        %v950 = vadd.f32 %v940, %v948
        %s951 = sld [smem:[#allocation10 + $0x2d]]
        %v952 = vstv %s951
        %v953 = vmul.f32 %v952, %v507
        %955 = vrot.lane.b32.xlu0 %v953, 32
        %v956 = vpop.permute.xlu0 %955
        %v957 = vrot.slane %v956, 7
        %v958 = vsel %vm536, %v957, %v956
        %v960 = vadd.f32 %v950, %v958
        %s961 = sld [smem:[#allocation10 + $0x34]]
        %v962 = vstv %s961
        %v963 = vmul.f32 %v962, %v542
        %v964 = vadd.f32 %v960, %v963
        %s965 = sld [smem:[#allocation10 + $0x3b]]
        %v966 = vstv %s965
        %v967 = vmul.f32 %v966, %v542
        %969 = vrot.lane.b32.xlu0 %v967, 112
        %v970 = vpop.permute.xlu0 %969
        %v971 = vrot.slane %v970, 1
        %v972 = vsel %vm479, %v970, %v971
        %v974 = vadd.f32 %v964, %v972
        %s975 = sld [smem:[#allocation10 + $0x42]]
        %v976 = vstv %s975
        %v977 = vmul.f32 %v976, %v542
        %979 = vrot.lane.b32.xlu0 %v977, 96
        %v980 = vpop.permute.xlu0 %979
        %v981 = vrot.slane %v980, 1
        %v982 = vsel %vm490, %v980, %v981
        %v984 = vadd.f32 %v974, %v982
        %s985 = sld [smem:[#allocation10 + $0x49]]
        %v986 = vld [vmem:[%s465] ss:$2 sm:$0x3]
        %v987 = vstv %s985
        %v988 = vmul.f32 %v987, %v986
        %990 = vrot.lane.b32.xlu0 %v988, 80
        %v991 = vpop.permute.xlu0 %990
        %v992 = vrot.slane %v991, 7
        %v993 = vsel %vm501, %v992, %v991
        %v995 = vadd.f32 %v984, %v993
        %s996 = sld [smem:[#allocation10 + $0x50]]
        %v997 = vstv %s996
        %v998 = vmul.f32 %v997, %v578
        %1000 = vrot.lane.b32.xlu0 %v998, 64
        %v1001 = vpop.permute.xlu0 %1000
        %v1002 = vrot.slane %v1001, 7
        %v1003 = vsel %vm514, %v1002, %v1001
        %v1005 = vadd.f32 %v995, %v1003
        %s1006 = sld [smem:[#allocation10 + $0x57]]
        %v1007 = vstv %s1006
        %v1008 = vmul.f32 %v1007, %v578
        %1010 = vrot.lane.b32.xlu0 %v1008, 48
        %v1011 = vpop.permute.xlu0 %1010
        %v1012 = vrot.slane %v1011, 7
        %v1013 = vsel %vm525, %v1012, %v1011
        %v1015 = vadd.f32 %v1005, %v1013
        %s1016 = sld [smem:[#allocation10 + $0x5e]]
        %v1017 = vstv %s1016
        %v1018 = vmul.f32 %v1017, %v578
        %1020 = vrot.lane.b32.xlu0 %v1018, 32
        %v1021 = vpop.permute.xlu0 %1020
        %v1022 = vrot.slane %v1021, 7
        %v1023 = vsel %vm536, %v1022, %v1021
        %v1025 = vadd.f32 %v1015, %v1023
        %1027 = vrot.lane.b32.xlu0 %v1025, 48
        %v1028 = vpop.permute.xlu0 %1027
        %v1029 = vrot.slane %v1028, 1
        %v1030 = vsel %vm525, %v1028, %v1029
        %v1032 = vadd.f32 %v895, %v1030
        %s1033 = sld [smem:[#allocation10 + $0x4]]
        %v1034 = vstv %s1033
        %v1035 = vmul.f32 %v1034, %v468
        %v1036 = vadd.f32 %v1035, 0.0
        %s1037 = sld [smem:[#allocation10 + $0xb]]
        %v1038 = vstv %s1037
        %v1039 = vmul.f32 %v1038, %v468
        %1041 = vrot.lane.b32.xlu0 %v1039, 112
        %v1042 = vpop.permute.xlu0 %1041
        %v1043 = vrot.slane %v1042, 1
        %v1044 = vsel %vm479, %v1042, %v1043
        %v1046 = vadd.f32 %v1036, %v1044
        %s1047 = sld [smem:[#allocation10 + $0x12]]
        %v1048 = vstv %s1047
        %v1049 = vmul.f32 %v1048, %v468
        %1051 = vrot.lane.b32.xlu0 %v1049, 96
        %v1052 = vpop.permute.xlu0 %1051
        %v1053 = vrot.slane %v1052, 1
        %v1054 = vsel %vm490, %v1052, %v1053
        %v1056 = vadd.f32 %v1046, %v1054
        %s1057 = sld [smem:[#allocation10 + $0x19]]
        %v1058 = vstv %s1057
        %v1059 = vmul.f32 %v1058, %v507
        %1061 = vrot.lane.b32.xlu0 %v1059, 80
        %v1062 = vpop.permute.xlu0 %1061
        %v1063 = vrot.slane %v1062, 7
        %v1064 = vsel %vm501, %v1063, %v1062
        %v1066 = vadd.f32 %v1056, %v1064
        %s1067 = sld [smem:[#allocation10 + $0x20]]
        %v1068 = vstv %s1067
        %v1069 = vmul.f32 %v1068, %v507
        %1071 = vrot.lane.b32.xlu0 %v1069, 64
        %v1072 = vpop.permute.xlu0 %1071
        %v1073 = vrot.slane %v1072, 7
        %v1074 = vsel %vm514, %v1073, %v1072
        %v1076 = vadd.f32 %v1066, %v1074
        %s1077 = sld [smem:[#allocation10 + $0x27]]
        %v1078 = vstv %s1077
        %v1079 = vmul.f32 %v1078, %v507
        %1081 = vrot.lane.b32.xlu0 %v1079, 48
        %v1082 = vpop.permute.xlu0 %1081
        %v1083 = vrot.slane %v1082, 7
        %v1084 = vsel %vm525, %v1083, %v1082
        %v1086 = vadd.f32 %v1076, %v1084
        %s1087 = sld [smem:[#allocation10 + $0x2e]]
        %v1088 = vstv %s1087
        %v1089 = vmul.f32 %v1088, %v507
        %1091 = vrot.lane.b32.xlu0 %v1089, 32
        %v1092 = vpop.permute.xlu0 %1091
        %v1093 = vrot.slane %v1092, 7
        %v1094 = vsel %vm536, %v1093, %v1092
        %v1096 = vadd.f32 %v1086, %v1094
        %s1097 = sld [smem:[#allocation10 + $0x35]]
        %v1098 = vstv %s1097
        %v1099 = vmul.f32 %v1098, %v542
        %v1100 = vadd.f32 %v1096, %v1099
        %s1101 = sld [smem:[#allocation10 + $0x3c]]
        %v1102 = vstv %s1101
        %v1103 = vmul.f32 %v1102, %v542
        %1105 = vrot.lane.b32.xlu0 %v1103, 112
        %v1106 = vpop.permute.xlu0 %1105
        %v1107 = vrot.slane %v1106, 1
        %v1108 = vsel %vm479, %v1106, %v1107
        %v1110 = vadd.f32 %v1100, %v1108
        %s1111 = sld [smem:[#allocation10 + $0x43]]
        %v1112 = vstv %s1111
        %v1113 = vmul.f32 %v1112, %v542
        %1115 = vrot.lane.b32.xlu0 %v1113, 96
        %v1116 = vpop.permute.xlu0 %1115
        %v1117 = vrot.slane %v1116, 1
        %v1118 = vsel %vm490, %v1116, %v1117
        %v1120 = vadd.f32 %v1110, %v1118
        %s1121 = sld [smem:[#allocation10 + $0x4a]]
        %v1122 = vstv %s1121
        %v1123 = vmul.f32 %v1122, %v578
        %1125 = vrot.lane.b32.xlu0 %v1123, 80
        %v1126 = vpop.permute.xlu0 %1125
        %v1127 = vrot.slane %v1126, 7
        %v1128 = vsel %vm501, %v1127, %v1126
        %v1130 = vadd.f32 %v1120, %v1128
        %s1131 = sld [smem:[#allocation10 + $0x51]]
        %v1132 = vstv %s1131
        %v1133 = vmul.f32 %v1132, %v578
        %1135 = vrot.lane.b32.xlu0 %v1133, 64
        %v1136 = vpop.permute.xlu0 %1135
        %v1137 = vrot.slane %v1136, 7
        %v1138 = vsel %vm514, %v1137, %v1136
        %v1140 = vadd.f32 %v1130, %v1138
        %s1141 = sld [smem:[#allocation10 + $0x58]]
        %v1142 = vstv %s1141
        %v1143 = vmul.f32 %v1142, %v578
        %1145 = vrot.lane.b32.xlu0 %v1143, 48
        %v1146 = vpop.permute.xlu0 %1145
        %v1147 = vrot.slane %v1146, 7
        %v1148 = vsel %vm525, %v1147, %v1146
        %v1150 = vadd.f32 %v1140, %v1148
        %s1151 = sld [smem:[#allocation10 + $0x5f]]
        %v1152 = vstv %s1151
        %v1153 = vmul.f32 %v1152, %v578
        %1155 = vrot.lane.b32.xlu0 %v1153, 32
        %v1156 = vpop.permute.xlu0 %1155
        %v1157 = vrot.slane %v1156, 7
        %v1158 = vsel %vm536, %v1157, %v1156
        %v1160 = vadd.f32 %v1150, %v1158
        %s1161 = scalar_lea.vmem %s3, 4
        %v1162 = vld [vmem:[%s1161] ss:$8 sm:$0x3]
        %1164 = vrot.lane.b32.xlu0 %v1160, 47
        %v1165 = vpop.permute.xlu0 %1164
        %v1166 = vrot.slane %v1165, 1
        %vm1167 = vcmask 384000
        %v1168 = vsel %vm1167, %v1165, %v1166
        %v1170 = vmul.f32 %v1162, %v1168
        %v1171 = vadd.f32 %v1032, %v1170
        %s1172 = sld [smem:[#allocation10 + $0x5]]
        %v1173 = vstv %s1172
        %v1174 = vmul.f32 %v1173, %v468
        %v1175 = vadd.f32 %v1174, 0.0
        %s1176 = sld [smem:[#allocation10 + $0xc]]
        %v1177 = vstv %s1176
        %v1178 = vmul.f32 %v1177, %v468
        %1180 = vrot.lane.b32.xlu0 %v1178, 112
        %v1181 = vpop.permute.xlu0 %1180
        %v1182 = vrot.slane %v1181, 1
        %v1183 = vsel %vm479, %v1181, %v1182
        %v1185 = vadd.f32 %v1175, %v1183
        %s1186 = sld [smem:[#allocation10 + $0x13]]
        %v1187 = vstv %s1186
        %v1188 = vmul.f32 %v1187, %v468
        %1190 = vrot.lane.b32.xlu0 %v1188, 96
        %v1191 = vpop.permute.xlu0 %1190
        %v1192 = vrot.slane %v1191, 1
        %v1193 = vsel %vm490, %v1191, %v1192
        %v1195 = vadd.f32 %v1185, %v1193
        %s1196 = sld [smem:[#allocation10 + $0x1a]]
        %v1197 = vstv %s1196
        %v1198 = vmul.f32 %v1197, %v507
        %1200 = vrot.lane.b32.xlu0 %v1198, 80
        %v1201 = vpop.permute.xlu0 %1200
        %v1202 = vrot.slane %v1201, 7
        %v1203 = vsel %vm501, %v1202, %v1201
        %v1205 = vadd.f32 %v1195, %v1203
        %s1206 = sld [smem:[#allocation10 + $0x21]]
        %v1207 = vstv %s1206
        %v1208 = vmul.f32 %v1207, %v507
        %1210 = vrot.lane.b32.xlu0 %v1208, 64
        %v1211 = vpop.permute.xlu0 %1210
        %v1212 = vrot.slane %v1211, 7
        %v1213 = vsel %vm514, %v1212, %v1211
        %v1215 = vadd.f32 %v1205, %v1213
        %s1216 = sld [smem:[#allocation10 + $0x28]]
        %v1217 = vstv %s1216
        %v1218 = vmul.f32 %v1217, %v507
        %1220 = vrot.lane.b32.xlu0 %v1218, 48
        %v1221 = vpop.permute.xlu0 %1220
        %v1222 = vrot.slane %v1221, 7
        %v1223 = vsel %vm525, %v1222, %v1221
        %v1225 = vadd.f32 %v1215, %v1223
        %s1226 = sld [smem:[#allocation10 + $0x2f]]
        %v1227 = vstv %s1226
        %v1228 = vmul.f32 %v1227, %v507
        %1230 = vrot.lane.b32.xlu0 %v1228, 32
        %v1231 = vpop.permute.xlu0 %1230
        %v1232 = vrot.slane %v1231, 7
        %v1233 = vsel %vm536, %v1232, %v1231
        %v1235 = vadd.f32 %v1225, %v1233
        %s1236 = sld [smem:[#allocation10 + $0x36]]
        %v1237 = vstv %s1236
        %v1238 = vmul.f32 %v1237, %v542
        %v1239 = vadd.f32 %v1235, %v1238
        %s1240 = sld [smem:[#allocation10 + $0x3d]]
        %v1241 = vstv %s1240
        %v1242 = vmul.f32 %v1241, %v542
        %1244 = vrot.lane.b32.xlu0 %v1242, 112
        %v1245 = vpop.permute.xlu0 %1244
        %v1246 = vrot.slane %v1245, 1
        %v1247 = vsel %vm479, %v1245, %v1246
        %v1249 = vadd.f32 %v1239, %v1247
        %s1250 = sld [smem:[#allocation10 + $0x44]]
        %v1251 = vstv %s1250
        %v1252 = vmul.f32 %v1251, %v542
        %1254 = vrot.lane.b32.xlu0 %v1252, 96
        %v1255 = vpop.permute.xlu0 %1254
        %v1256 = vrot.slane %v1255, 1
        %v1257 = vsel %vm490, %v1255, %v1256
        %v1259 = vadd.f32 %v1249, %v1257
        %s1260 = sld [smem:[#allocation10 + $0x4b]]
        %v1261 = vstv %s1260
        %v1262 = vmul.f32 %v1261, %v578
        %1264 = vrot.lane.b32.xlu0 %v1262, 80
        %v1265 = vpop.permute.xlu0 %1264
        %v1266 = vrot.slane %v1265, 7
        %v1267 = vsel %vm501, %v1266, %v1265
        %v1269 = vadd.f32 %v1259, %v1267
        %s1270 = sld [smem:[#allocation10 + $0x52]]
        %v1271 = vstv %s1270
        %v1272 = vmul.f32 %v1271, %v578
        %1274 = vrot.lane.b32.xlu0 %v1272, 64
        %v1275 = vpop.permute.xlu0 %1274
        %v1276 = vrot.slane %v1275, 7
        %v1277 = vsel %vm514, %v1276, %v1275
        %v1279 = vadd.f32 %v1269, %v1277
        %s1280 = sld [smem:[#allocation10 + $0x59]]
        %v1281 = vstv %s1280
        %v1282 = vmul.f32 %v1281, %v578
        %1284 = vrot.lane.b32.xlu0 %v1282, 48
        %v1285 = vpop.permute.xlu0 %1284
        %v1286 = vrot.slane %v1285, 7
        %v1287 = vsel %vm525, %v1286, %v1285
        %v1289 = vadd.f32 %v1279, %v1287
        %s1290 = sld [smem:[#allocation10 + $0x60]]
        %v1291 = vstv %s1290
        %v1292 = vmul.f32 %v1291, %v578
        %1294 = vrot.lane.b32.xlu0 %v1292, 32
        %v1295 = vpop.permute.xlu0 %1294
        %v1296 = vrot.slane %v1295, 7
        %v1297 = vsel %vm536, %v1296, %v1295
        %v1299 = vadd.f32 %v1289, %v1297
        %s1300 = scalar_lea.vmem %s3, 5
        %v1301 = vld [vmem:[%s1300] ss:$8 sm:$0x3]
        %1303 = vrot.lane.b32.xlu0 %v1299, 46
        %v1304 = vpop.permute.xlu0 %1303
        %v1305 = vrot.slane %v1304, 1
        %vm1306 = vcmask 375808
        %v1307 = vsel %vm1306, %v1304, %v1305
        %v1309 = vmul.f32 %v1301, %v1307
        %v1310 = vadd.f32 %v1171, %v1309
        %s1311 = sld [smem:[#allocation10 + $0x6]]
        %v1312 = vstv %s1311
        %v1313 = vmul.f32 %v1312, %v468
        %v1314 = vadd.f32 %v1313, 0.0
        %s1315 = sld [smem:[#allocation10 + $0xd]]
        %v1316 = vstv %s1315
        %v1317 = vmul.f32 %v1316, %v468
        %1319 = vrot.lane.b32.xlu0 %v1317, 112
        %v1320 = vpop.permute.xlu0 %1319
        %v1321 = vrot.slane %v1320, 1
        %v1322 = vsel %vm479, %v1320, %v1321
        %v1324 = vadd.f32 %v1314, %v1322
        %s1325 = sld [smem:[#allocation10 + $0x14]]
        %v1326 = vstv %s1325
        %v1327 = vmul.f32 %v1326, %v468
        %1329 = vrot.lane.b32.xlu0 %v1327, 96
        %v1330 = vpop.permute.xlu0 %1329
        %v1331 = vrot.slane %v1330, 1
        %v1332 = vsel %vm490, %v1330, %v1331
        %v1334 = vadd.f32 %v1324, %v1332
        %s1335 = sld [smem:[#allocation10 + $0x1b]]
        %v1336 = vstv %s1335
        %v1337 = vmul.f32 %v1336, %v507
        %1339 = vrot.lane.b32.xlu0 %v1337, 80
        %v1340 = vpop.permute.xlu0 %1339
        %v1341 = vrot.slane %v1340, 7
        %v1342 = vsel %vm501, %v1341, %v1340
        %v1344 = vadd.f32 %v1334, %v1342
        %s1345 = sld [smem:[#allocation10 + $0x22]]
        %v1346 = vstv %s1345
        %v1347 = vmul.f32 %v1346, %v507
        %1349 = vrot.lane.b32.xlu0 %v1347, 64
        %v1350 = vpop.permute.xlu0 %1349
        %v1351 = vrot.slane %v1350, 7
        %v1352 = vsel %vm514, %v1351, %v1350
        %v1354 = vadd.f32 %v1344, %v1352
        %s1355 = sld [smem:[#allocation10 + $0x29]]
        %v1356 = vstv %s1355
        %v1357 = vmul.f32 %v1356, %v507
        %1359 = vrot.lane.b32.xlu0 %v1357, 48
        %v1360 = vpop.permute.xlu0 %1359
        %v1361 = vrot.slane %v1360, 7
        %v1362 = vsel %vm525, %v1361, %v1360
        %v1364 = vadd.f32 %v1354, %v1362
        %s1365 = sld [smem:[#allocation10 + $0x30]]
        %v1366 = vstv %s1365
        %v1367 = vmul.f32 %v1366, %v507
        %1369 = vrot.lane.b32.xlu0 %v1367, 32
        %v1370 = vpop.permute.xlu0 %1369
        %v1371 = vrot.slane %v1370, 7
        %v1372 = vsel %vm536, %v1371, %v1370
        %v1374 = vadd.f32 %v1364, %v1372
        %s1375 = sld [smem:[#allocation10 + $0x37]]
        %v1376 = vstv %s1375
        %v1377 = vmul.f32 %v1376, %v542
        %v1378 = vadd.f32 %v1374, %v1377
        %s1379 = sld [smem:[#allocation10 + $0x3e]]
        %v1380 = vstv %s1379
        %v1381 = vmul.f32 %v1380, %v542
        %1383 = vrot.lane.b32.xlu0 %v1381, 112
        %v1384 = vpop.permute.xlu0 %1383
        %v1385 = vrot.slane %v1384, 1
        %v1386 = vsel %vm479, %v1384, %v1385
        %v1388 = vadd.f32 %v1378, %v1386
        %s1389 = sld [smem:[#allocation10 + $0x45]]
        %v1390 = vstv %s1389
        %v1391 = vmul.f32 %v1390, %v542
        %1393 = vrot.lane.b32.xlu0 %v1391, 96
        %v1394 = vpop.permute.xlu0 %1393
        %v1395 = vrot.slane %v1394, 1
        %v1396 = vsel %vm490, %v1394, %v1395
        %v1398 = vadd.f32 %v1388, %v1396
        %s1399 = sld [smem:[#allocation10 + $0x4c]]
        %v1400 = vstv %s1399
        %v1401 = vmul.f32 %v1400, %v578
        %1403 = vrot.lane.b32.xlu0 %v1401, 80
        %v1404 = vpop.permute.xlu0 %1403
        %v1405 = vrot.slane %v1404, 7
        %v1406 = vsel %vm501, %v1405, %v1404
        %v1408 = vadd.f32 %v1398, %v1406
        %s1409 = sld [smem:[#allocation10 + $0x53]]
        %v1410 = vstv %s1409
        %v1411 = vmul.f32 %v1410, %v578
        %1413 = vrot.lane.b32.xlu0 %v1411, 64
        %v1414 = vpop.permute.xlu0 %1413
        %v1415 = vrot.slane %v1414, 7
        %v1416 = vsel %vm514, %v1415, %v1414
        %v1418 = vadd.f32 %v1408, %v1416
        %s1419 = sld [smem:[#allocation10 + $0x5a]]
        %v1420 = vstv %s1419
        %v1421 = vmul.f32 %v1420, %v578
        %1423 = vrot.lane.b32.xlu0 %v1421, 48
        %v1424 = vpop.permute.xlu0 %1423
        %v1425 = vrot.slane %v1424, 7
        %v1426 = vsel %vm525, %v1425, %v1424
        %v1428 = vadd.f32 %v1418, %v1426
        %s1429 = sld [smem:[#allocation10 + $0x61]]
        %v1430 = vstv %s1429
        %v1431 = vmul.f32 %v1430, %v578
        %1433 = vrot.lane.b32.xlu0 %v1431, 32
        %v1434 = vpop.permute.xlu0 %1433
        %v1435 = vrot.slane %v1434, 7
        %v1436 = vsel %vm536, %v1435, %v1434
        %v1438 = vadd.f32 %v1428, %v1436
        %s1439 = scalar_lea.vmem %s3, 6
        %v1440 = vld [vmem:[%s1439] ss:$8 sm:$0x3]
        %1442 = vrot.lane.b32.xlu0 %v1438, 45
        %v1443 = vpop.permute.xlu0 %1442
        %v1444 = vrot.slane %v1443, 1
        %vm1445 = vcmask 367616
        %v1446 = vsel %vm1445, %v1443, %v1444
        %v1448 = vmul.f32 %v1440, %v1446
        %v1449 = vadd.f32 %v1310, %v1448
        %v1450 = vxor.u32 %v1449, 2147483648
        %v1451 = vmul.f32 %v1450, 1.442695
        %v1452 = vpow.pop %v1451
        %v1453 = vadd.f32 %v1452, 1.0
        %v1454 = vrcp.pop %v1453
        %v1455 = vmul.f32 1.0, %v1454
        %v1456 = vld [vmem:[%s270] sm:$0xff]
        %v1457 = vld [vmem:[#allocation3] sm:$0xf]
        %1459 = vset.pattern.permute.xlu0 0
        %1460 = vperm.xlu0 %1459, %v1457
        %v1461 = vpop.permute.xlu0 %1460
        %v1463 = vunpack.c.l.s4 839922192
        %v1464 = vunpack.c.0.s8 %v1463
        %v1465 = vlaneseq
        %v1466 = vshrl.u32 %v1465, 7
        %v1467 = vsub.s32 %v1464, %v1466
        %v1468 = vrot.slane %v1461, %v1467
        %v1470 = vmul.f32 %v1456, %v1468
        %v1472 = vlaneseq
        %v1473 = vshrl.u32 %v1472, 7
        %v1474 = vsub.s32 0, %v1473
        %v1475 = vrot.slane %v1455, %v1474
        %v1476 = vlaneseq
        %v1477 = vshrl.u32 %v1476, 7
        %v1478 = vsub.s32 1, %v1477
        %v1479 = vrot.slane %v1455, %v1478
        %v1480 = vcombine.low %v1475, %v1479
        %v1482 = vmul.f32 %v1470, %v1480
        %s1483 = smul.addr %s268, 4
        %s1484 = scalar_lea.vmem %s267, %s1483 [#allocation11]
        %1485 = vst [vmem:[%s1484] sm:$0xff] %v1482
        %s1486 = sand.u32 %s142, 1
        %s1487 = scalar_lea.sflag [#allocation6], %s1486
        %s1488 = sand.u32 %s142, 1
        %s1489 = smul.addr %s1488, 8
        %s1490 = scalar_lea.vmem [#allocation11], %s1489
        // Predicated region
        $region53: #{tpu_custom_call.1} parent=39 // pred_check
          %p1491 = pneg %p152
        $region54: #{tpu_custom_call.1} parent=39 // pred_check_branch
          %1493 = sbr.rel (%p1491) target = $region56
        $region55: #{tpu_custom_call.1} parent=39 // pred_region
          %s1495 = ssub.s32 128, 128
          %1496 = vsyncadd %s1487, %s1495
          %s1497 = smul.addr %s24, 2
          %s1498 = smul.addr %s1497, 64
          %s1499 = scalar_lea.hbm %s5, %s1498
          %s1501 = sshll.u32 %s1490, 4
          %s1502 = int_to_ptr.vmem [resolvable:$true] %s1501
          %1504 = dma.vmem_to_hbm [thread:$0]  %s1502, 128, %s1499, %s1487
        $region56: #{tpu_custom_call.1} parent=39 // pred_fallthru
          _
      $region40: #{tpu_custom_call.1} parent=5 // pred_fallthru
        _
      %p1505 = scmp.le.s32.totalorder 2, %s19
      // Predicated region
      $region57: #{tpu_custom_call.1} parent=5 // pred_check
        %p1506 = pneg %p1505
      $region58: #{tpu_custom_call.1} parent=5 // pred_check_branch
        %1508 = sbr.rel (%p1506) target = $region60
      $region59: #{tpu_custom_call.1} parent=5 // pred_region
        %s1509 = ssub.s32 %s19, 2
        // Predicated region
        $region61: #{tpu_custom_call.1} parent=59 // pred_check
          %p1510 = pneg %p158
        $region62: #{tpu_custom_call.1} parent=59 // pred_check_branch
          %1512 = sbr.rel (%p1510) target = $region64
        $region63: #{tpu_custom_call.1} parent=59 // pred_region
          %s1513 = sand.u32 %s143, 1
          %s1514 = scalar_lea.sflag [#allocation6], %s1513
          %s1515 = sand.u32 %s143, 1
          %s1516 = smul.addr %s1515, 8
          %s1517 = scalar_lea.vmem [#allocation11], %s1516
          %1518 = dma.done %s1514, 128
        $region64: #{tpu_custom_call.1} parent=59 // pred_fallthru
          _
      $region60: #{tpu_custom_call.1} parent=5 // pred_fallthru
        _
    $region6: #{tpu_custom_call.1} parent=1 // loop_footer
      %s23 = sadd.s32 1, %s19
    $region7: #{tpu_custom_call.1} parent=1 // loop_footer_branch
      %18 = sbr.rel target = $region3
    $region8: #{tpu_custom_call.1} parent=1 // loop_exit
      _
    %1519 = vsyncpa [#allocation5], 1
    %s1520 = scalar_lea.sflag [#allocation5], 1
    %1521 = vsyncpa %s1520, 1
    %1522 = vsyncpa [#allocation9], 1
    %1523 = vsyncpa [#allocation6], 1
    %s1524 = scalar_lea.sflag [#allocation6], 1
    %1525 = vsyncpa %s1524, 1
    %1526 = vsyncpa [#allocation7], 1
    %s1527 = scalar_lea.sflag [#allocation7], 1
    %1528 = vsyncpa %s1527, 1

</llo_original>
